<compile_context>
chip_gen: v6e
topology: v6e:2x2x1
jax: 0.10.0
libtpu: 0.0.40
codegen_flags: <defaults>
</compile_context>

<pallas_src>
import jax
import jax.numpy as jnp
from jax.experimental import pallas as pl
from jax.experimental.pallas import tpu as pltpu

BN_EPS = 1e-5
SN_EPS = 1e-12

# Packed layout (fixed):
#   block-diag weight slabs (7, 2P, 2P):
#     0-3 : [G1.w_i | G2.w_i]   i = 1..4   (slot0 = G1, slot1 = G2)
#     4-6 : [D1.w_i | D2.w_i]   i = 1..3   (slot0 = D1, slot1 = D2)
#   vector rows (16, 2P):
#     0 b1, 1 gamma1, 2 beta1, 3 b2, 4 b3, 5 gamma2, 6 beta2, 7 b4   (G pair)
#     8 b1, 9 gamma1, 10 beta1, 11 b2, 12 gamma2, 13 beta2, 14 b3    (D pair)
#   scale rows (8, 2P): row l = [1/sigma_slot0(l) ... | 1/sigma_slot1(l) ...]


# ----------------------------- Pallas kernel ------------------------------ #
def cyclegan_kernel(x_ref, w_ref, vec_ref, scl_ref, out_ref):
    P = x_ref.shape[1] // 2
    B = x_ref.shape[0]
    inv_b = 1.0 / B

    def vrow(r):                       # (1, 2P) row of the packed vector block
        return vec_ref[pl.ds(r, 1), :]

    def linear(x, l, brow):
        # raw (out,in) block-diag weight; contract x dim 1 with w dim 1 -> x @ W^T
        w = w_ref[l].astype(jnp.float32)           # bf16 storage, f32 math
        y = jax.lax.dot_general(
            x, w,
            dimension_numbers=(((1,), (1,)), ((), ())),
            preferred_element_type=jnp.float32)
        # spectral norm as per-slot output scale, THEN bias:
        #   x @ (W/s)^T + b == (x @ W^T) * (1/s) + b
        return y * scl_ref[pl.ds(l, 1), :] + vrow(brow)

    def bn_relu(h, grow, brow):
        # One-pass BatchNorm (training semantics, biased variance).
        # Note: E[h^2]-mean^2 can cancel for large activations; fine at unit scale.
        mu = jnp.sum(h, axis=0, keepdims=True) * inv_b
        m2 = jnp.sum(h * h, axis=0, keepdims=True) * inv_b
        var = m2 - mu * mu
        scale = vrow(grow) * jax.lax.rsqrt(var + BN_EPS)
        shift = vrow(brow) - mu * scale
        return jnp.maximum(h * scale + shift, 0.0)

    def gen_pair(x):                   # block-diag [G1 | G2] generator
        h = bn_relu(linear(x, 0, 0), 1, 2)
        h = linear(h, 1, 3)
        h = bn_relu(linear(h, 2, 4), 5, 6)
        return linear(h, 3, 7)

    def disc_pair(x):                  # block-diag [D1 | D2] discriminator
        h = bn_relu(linear(x, 4, 8), 9, 10)
        h = bn_relu(linear(h, 5, 11), 12, 13)
        return linear(h, 6, 14)

    x0 = x_ref[...]                                        # [t1   | t2  ]
    y1 = gen_pair(x0)                                      # [gen2 | gen1]
    x2 = jnp.concatenate([y1[:, P:], y1[:, :P]], axis=-1)  # [gen1 | gen2]
    y2 = gen_pair(x2)                                      # [cyc2 | cyc1]
    y3 = disc_pair(x2)                                     # [d1   | d2  ]

    out_ref[0, :, :] = y1
    out_ref[1, :, :] = y2
    out_ref[2, :, :] = y3


# ------------------------- one-time parameter packing ---------------------- #
def _round_up(x, m):
    return ((x + m - 1) // m) * m


def _pad_mat(w, P):
    return jnp.zeros((P, P), jnp.float32).at[: w.shape[0], : w.shape[1]].set(
        w.astype(jnp.float32))


def _pad_vec(v, P):
    return jnp.zeros((P,), jnp.float32).at[: v.shape[0]].set(v.astype(jnp.float32))


def _blockdiag(wa, wb, P):
    m = jnp.zeros((2 * P, 2 * P), jnp.float32)
    m = m.at[: wa.shape[0], : wa.shape[1]].set(wa.astype(jnp.float32))
    m = m.at[P: P + wb.shape[0], P: P + wb.shape[1]].set(wb.astype(jnp.float32))
    return m


def _pair_row(a, b, P):
    r = jnp.zeros((2 * P,), jnp.float32)
    r = r.at[: a.shape[0]].set(a.astype(jnp.float32))
    r = r.at[P: P + b.shape[0]].set(b.astype(jnp.float32))
    return r


def pack_cyclegan_params(params):
    """One-time packing (keep the result in the param pytree / optimizer state).

    Returns:
      wpack: (7, 2P, 2P) bf16 block-diagonal raw weights (stream-paired).
      w14  : (14, P, P)  f32 padded raw weights for the batched power iteration.
      u14  : (14, P)     f32 padded spectral-norm u vectors.
      vpack: (16, 2P)    f32 paired bias / BN gamma / BN beta rows.
    """
    g1, g2, d1, d2 = params["g1"], params["g2"], params["d1"], params["d2"]
    T = g1["w1"].shape[1]
    H = g1["w1"].shape[0]
    L = g1["w2"].shape[0]
    P = _round_up(max(T, H, L, 1), 128)

    pairs = ([(g1[f"w{i}"], g2[f"w{i}"]) for i in range(1, 5)]
             + [(d1[f"w{i}"], d2[f"w{i}"]) for i in range(1, 4)])
    u_pairs = ([(g1[f"u{i}"], g2[f"u{i}"]) for i in range(1, 5)]
               + [(d1[f"u{i}"], d2[f"u{i}"]) for i in range(1, 4)])

    wpack = jnp.stack([_blockdiag(a, b, P) for a, b in pairs]).astype(jnp.bfloat16)
    w14 = jnp.stack([_pad_mat(w, P) for pair in pairs for w in pair])
    u14 = jnp.stack([_pad_vec(u, P) for pair in u_pairs for u in pair])

    rows = [
        _pair_row(g1["b1"], g2["b1"], P), _pair_row(g1["gamma1"], g2["gamma1"], P),
        _pair_row(g1["beta1"], g2["beta1"], P), _pair_row(g1["b2"], g2["b2"], P),
        _pair_row(g1["b3"], g2["b3"], P), _pair_row(g1["gamma2"], g2["gamma2"], P),
        _pair_row(g1["beta2"], g2["beta2"], P), _pair_row(g1["b4"], g2["b4"], P),
        _pair_row(d1["b1"], d2["b1"], P), _pair_row(d1["gamma1"], d2["gamma1"], P),
        _pair_row(d1["beta1"], d2["beta1"], P), _pair_row(d1["b2"], d2["b2"], P),
        _pair_row(d1["gamma2"], d2["gamma2"], P), _pair_row(d1["beta2"], d2["beta2"], P),
        _pair_row(d1["b3"], d2["b3"], P), jnp.zeros((2 * P,), jnp.float32),
    ]
    vpack = jnp.stack(rows)

    return dict(wpack=wpack, w14=w14, u14=u14, vpack=vpack)


# --------------------------- forward (hot path) ----------------------------- #
def _batched_inv_sigma(w14, u14):
    """PyTorch spectral_norm, 1 power iteration, batched over all 14 weights."""
    def one(w, u):
        v = w.T @ u
        v = v / (jnp.linalg.norm(v) + SN_EPS)
        wv = w @ v
        u_new = wv / (jnp.linalg.norm(wv) + SN_EPS)
        sigma = jnp.dot(u_new, wv)
        return 1.0 / sigma
    # PyTorch runs the power iteration under no_grad.
    return jax.lax.stop_gradient(jax.vmap(one)(w14, u14))


@jax.jit
def cyclegan_forward(packed, transitions_1, transitions_2):
    t1 = transitions_1.astype(jnp.float32)
    t2 = transitions_2.astype(jnp.float32)
    B, T = t1.shape
    P = packed["wpack"].shape[1] // 2

    # Batched spectral norm -> per-slot 1/sigma lane rows (7, 2P) -> pad to 8.
    isig = _batched_inv_sigma(packed["w14"], packed["u14"])          # (14,)
    spack = jnp.repeat(isig.reshape(7, 2), P, axis=1)                # (7, 2P)
    spack = jnp.pad(spack, ((0, 1), (0, 0))).astype(jnp.float32)     # (8, 2P)

    # Lane-dense paired input [t1_pad | t2_pad].
    x = jnp.concatenate([jnp.pad(t1, ((0, 0), (0, P - T))),
                         jnp.pad(t2, ((0, 0), (0, P - T)))], axis=1)  # (B, 2P)

    vmem = pl.BlockSpec(memory_space=pltpu.MemorySpace.VMEM)
    out = pl.pallas_call(
        cyclegan_kernel,
        out_shape=jax.ShapeDtypeStruct((3, B, 2 * P), jnp.float32),
        in_specs=[vmem, vmem, vmem, vmem],
        out_specs=vmem,
    )(x, packed["wpack"], packed["vpack"], spack)

    gen2, gen1 = out[0, :, :T], out[0, :, P:P + T]
    cyc2, cyc1 = out[1, :, :T], out[1, :, P:P + T]
    d1, d2 = out[2, :, :1], out[2, :, P:P + 1]

    cycle_consistency_loss = jnp.mean((t1 - cyc1) ** 2) + jnp.mean((t2 - cyc2) ** 2)
    labels = jnp.ones((B, 1), jnp.float32)
    gan_loss = (jnp.mean(jnp.abs(d1 - labels)) + jnp.mean(jnp.abs(d2 - labels))) / 2.0

    return dict(
        cycle_consistency_loss=cycle_consistency_loss,
        gan_loss=gan_loss,
        generated_transitions_1=gen1,
        generated_transitions_2=gen2,
        cycle_transitions_1=cyc1,
        cycle_transitions_2=cyc2,
        discriminated_result_1=d1,
        discriminated_result_2=d2,
    )


# --------------------------- parameter init -------------------------------- #
def _lin_init(kw, kb, fan_in, fan_out):
    bound = 1.0 / (fan_in ** 0.5)
    w = jax.random.uniform(kw, (fan_out, fan_in), jnp.float32, -bound, bound)
    b = jax.random.uniform(kb, (fan_out,), jnp.float32, -bound, bound)
    return w, b


def _sn_u_init(k, dim):
    u = jax.random.normal(k, (dim,), jnp.float32)
    return u / (jnp.linalg.norm(u) + SN_EPS)


def init_generator_params(key, transition_size, latent_dim, hidden_dim):
    T, L, H = transition_size, latent_dim, hidden_dim
    ks = jax.random.split(key, 12)
    w1, b1 = _lin_init(ks[0], ks[1], T, H)
    w2, b2 = _lin_init(ks[2], ks[3], H, L)
    w3, b3 = _lin_init(ks[4], ks[5], L, H)
    w4, b4 = _lin_init(ks[6], ks[7], H, T)
    return {
        "w1": w1, "b1": b1, "u1": _sn_u_init(ks[8], H),
        "w2": w2, "b2": b2, "u2": _sn_u_init(ks[9], L),
        "w3": w3, "b3": b3, "u3": _sn_u_init(ks[10], H),
        "w4": w4, "b4": b4, "u4": _sn_u_init(ks[11], T),
        "gamma1": jnp.ones((H,), jnp.float32), "beta1": jnp.zeros((H,), jnp.float32),
        "gamma2": jnp.ones((H,), jnp.float32), "beta2": jnp.zeros((H,), jnp.float32),
    }


def init_discriminator_params(key, transition_size, hidden_dim):
    T, H = transition_size, hidden_dim
    ks = jax.random.split(key, 9)
    w1, b1 = _lin_init(ks[0], ks[1], T, H)
    w2, b2 = _lin_init(ks[2], ks[3], H, H)
    w3, b3 = _lin_init(ks[4], ks[5], H, 1)
    return {
        "w1": w1, "b1": b1, "u1": _sn_u_init(ks[6], H),
        "w2": w2, "b2": b2, "u2": _sn_u_init(ks[7], H),
        "w3": w3, "b3": b3, "u3": _sn_u_init(ks[8], 1),
        "gamma1": jnp.ones((H,), jnp.float32), "beta1": jnp.zeros((H,), jnp.float32),
        "gamma2": jnp.ones((H,), jnp.float32), "beta2": jnp.zeros((H,), jnp.float32),
    }


def init_cyclegan_params(key, transition_size, latent_dim, hidden_dim):
    kg1, kg2, kd1, kd2 = jax.random.split(key, 4)
    return {
        "g1": init_generator_params(kg1, transition_size, latent_dim, hidden_dim),
        "g2": init_generator_params(kg2, transition_size, latent_dim, hidden_dim),
        "d1": init_discriminator_params(kd1, transition_size, hidden_dim),
        "d2": init_discriminator_params(kd2, transition_size, hidden_dim),
    }
    # TODO(synk): PyTorch's spectral_norm hook updates `u` in-place on every sub-call
    # (so G1's second use inside one forward sees a slightly updated u); here a single
    # stateless power iteration per weight per forward is used, and BN running stats
    # are never updated (forward matches training-mode batch statistics only).


# --------------------------------- main ------------------------------------ #
if __name__ == "__main__":
    transition_size = 24
    latent_dim = 16
    hidden_dim = 32
    batch = 8

    key = jax.random.PRNGKey(0)
    k_param, k_t1, k_t2 = jax.random.split(key, 3)

    params = init_cyclegan_params(k_param, transition_size, latent_dim, hidden_dim)
    packed = pack_cyclegan_params(params)          # one-time, off the hot path
    t1 = jax.random.normal(k_t1, (batch, transition_size), jnp.float32)
    t2 = jax.random.normal(k_t2, (batch, transition_size), jnp.float32)

    out = cyclegan_forward(packed, t1, t2)
    jax.block_until_ready(out)

    assert out["generated_transitions_1"].shape == (batch, transition_size)
    assert out["generated_transitions_2"].shape == (batch, transition_size)
    assert out["cycle_transitions_1"].shape == (batch, transition_size)
    assert out["cycle_transitions_2"].shape == (batch, transition_size)
    assert out["discriminated_result_1"].shape == (batch, 1)
    assert out["discriminated_result_2"].shape == (batch, 1)
    assert out["cycle_consistency_loss"].shape == ()
    assert out["gan_loss"].shape == ()
    for leaf in jax.tree_util.tree_leaves(out):
        assert bool(jnp.all(jnp.isfinite(leaf)))

    print("KERNEL_OK")
</pallas_src>

<mosaic_0001>
module attributes {stable_mosaic.version = 11 : i64} {
  func.func @cyclegan_kernel(%arg0: memref<8x256xf32, #tpu.memory_space<vmem>>, %arg1: memref<7x256x256xbf16, #tpu.memory_space<vmem>>, %arg2: memref<16x256xf32, #tpu.memory_space<vmem>>, %arg3: memref<8x256xf32, #tpu.memory_space<vmem>>, %arg4: memref<3x8x256xf32, #tpu.memory_space<vmem>>) attributes {dimension_semantics = [], scalar_prefetch = 0 : i64, scratch_operands = 0 : i64, tpu.core_type = #tpu.core_type<tc>} {
    %c0 = arith.constant 0 : index
    %c0_0 = arith.constant 0 : index
    %0 = vector.load %arg0[%c0, %c0_0] : memref<8x256xf32, #tpu.memory_space<vmem>>, vector<8x256xf32>
    %c0_1 = arith.constant 0 : index
    %c0_2 = arith.constant 0 : index
    %c0_3 = arith.constant 0 : index
    %1 = vector.load %arg1[%c0_1, %c0_2, %c0_3] : memref<7x256x256xbf16, #tpu.memory_space<vmem>>, vector<1x256x256xbf16>
    %2 = vector.shape_cast %1 : vector<1x256x256xbf16> to vector<256x256xbf16>
    %3 = arith.extf %2 : vector<256x256xbf16> to vector<256x256xf32>
    %cst = arith.constant dense<0.000000e+00> : vector<8x256xf32>
    %4 = tpu.matmul %0, %3, %cst {dimension_numbers = #tpu.dot_dimension_numbers<[1], [1], [0], [0], [0, 0, 1, 0], [], []>} : vector<8x256xf32>, vector<256x256xf32>, vector<8x256xf32> -> vector<8x256xf32>
    %c0_4 = arith.constant 0 : index
    %c0_5 = arith.constant 0 : index
    %5 = vector.load %arg3[%c0_4, %c0_5] : memref<8x256xf32, #tpu.memory_space<vmem>>, vector<1x256xf32>
    %6 = vector.broadcast %5 : vector<1x256xf32> to vector<8x256xf32>
    %7 = arith.mulf %4, %6 : vector<8x256xf32>
    %c0_6 = arith.constant 0 : index
    %c0_7 = arith.constant 0 : index
    %8 = vector.load %arg2[%c0_6, %c0_7] : memref<16x256xf32, #tpu.memory_space<vmem>>, vector<1x256xf32>
    %9 = vector.broadcast %8 : vector<1x256xf32> to vector<8x256xf32>
    %10 = arith.addf %7, %9 : vector<8x256xf32>
    %cst_8 = arith.constant dense<0.000000e+00> : vector<256xf32>
    %11 = vector.multi_reduction <add>, %10, %cst_8 [0] : vector<8x256xf32> to vector<256xf32>
    %12 = vector.shape_cast %11 : vector<256xf32> to vector<1x256xf32>
    %cst_9 = arith.constant 1.250000e-01 : f32
    %13 = vector.broadcast %cst_9 : f32 to vector<1x256xf32>
    %14 = arith.mulf %12, %13 : vector<1x256xf32>
    %15 = arith.mulf %10, %10 : vector<8x256xf32>
    %cst_10 = arith.constant dense<0.000000e+00> : vector<256xf32>
    %16 = vector.multi_reduction <add>, %15, %cst_10 [0] : vector<8x256xf32> to vector<256xf32>
    %17 = vector.shape_cast %16 : vector<256xf32> to vector<1x256xf32>
    %cst_11 = arith.constant 1.250000e-01 : f32
    %18 = vector.broadcast %cst_11 : f32 to vector<1x256xf32>
    %19 = arith.mulf %17, %18 : vector<1x256xf32>
    %20 = arith.mulf %14, %14 : vector<1x256xf32>
    %21 = arith.subf %19, %20 : vector<1x256xf32>
    %c1 = arith.constant 1 : index
    %c0_12 = arith.constant 0 : index
    %22 = vector.load %arg2[%c1, %c0_12] : memref<16x256xf32, #tpu.memory_space<vmem>>, vector<1x256xf32>
    %cst_13 = arith.constant 9.99999974E-6 : f32
    %23 = vector.broadcast %cst_13 : f32 to vector<1x256xf32>
    %24 = arith.addf %21, %23 : vector<1x256xf32>
    %25 = math.rsqrt %24 : vector<1x256xf32>
    %26 = arith.mulf %22, %25 : vector<1x256xf32>
    %c2 = arith.constant 2 : index
    %c0_14 = arith.constant 0 : index
    %27 = vector.load %arg2[%c2, %c0_14] : memref<16x256xf32, #tpu.memory_space<vmem>>, vector<1x256xf32>
    %28 = arith.mulf %14, %26 : vector<1x256xf32>
    %29 = arith.subf %27, %28 : vector<1x256xf32>
    %30 = vector.broadcast %26 : vector<1x256xf32> to vector<8x256xf32>
    %31 = arith.mulf %10, %30 : vector<8x256xf32>
    %32 = vector.broadcast %29 : vector<1x256xf32> to vector<8x256xf32>
    %33 = arith.addf %31, %32 : vector<8x256xf32>
    %cst_15 = arith.constant 0.000000e+00 : f32
    %34 = vector.broadcast %cst_15 : f32 to vector<8x256xf32>
    %35 = arith.maximumf %33, %34 : vector<8x256xf32>
    %c1_16 = arith.constant 1 : index
    %c0_17 = arith.constant 0 : index
    %c0_18 = arith.constant 0 : index
    %36 = vector.load %arg1[%c1_16, %c0_17, %c0_18] : memref<7x256x256xbf16, #tpu.memory_space<vmem>>, vector<1x256x256xbf16>
    %37 = vector.shape_cast %36 : vector<1x256x256xbf16> to vector<256x256xbf16>
    %38 = arith.extf %37 : vector<256x256xbf16> to vector<256x256xf32>
    %cst_19 = arith.constant dense<0.000000e+00> : vector<8x256xf32>
    %39 = tpu.matmul %35, %38, %cst_19 {dimension_numbers = #tpu.dot_dimension_numbers<[1], [1], [0], [0], [0, 0, 1, 0], [], []>} : vector<8x256xf32>, vector<256x256xf32>, vector<8x256xf32> -> vector<8x256xf32>
    %c1_20 = arith.constant 1 : index
    %c0_21 = arith.constant 0 : index
    %40 = vector.load %arg3[%c1_20, %c0_21] : memref<8x256xf32, #tpu.memory_space<vmem>>, vector<1x256xf32>
    %41 = vector.broadcast %40 : vector<1x256xf32> to vector<8x256xf32>
    %42 = arith.mulf %39, %41 : vector<8x256xf32>
    %c3 = arith.constant 3 : index
    %c0_22 = arith.constant 0 : index
    %43 = vector.load %arg2[%c3, %c0_22] : memref<16x256xf32, #tpu.memory_space<vmem>>, vector<1x256xf32>
    %44 = vector.broadcast %43 : vector<1x256xf32> to vector<8x256xf32>
    %45 = arith.addf %42, %44 : vector<8x256xf32>
    %c2_23 = arith.constant 2 : index
    %c0_24 = arith.constant 0 : index
    %c0_25 = arith.constant 0 : index
    %46 = vector.load %arg1[%c2_23, %c0_24, %c0_25] : memref<7x256x256xbf16, #tpu.memory_space<vmem>>, vector<1x256x256xbf16>
    %47 = vector.shape_cast %46 : vector<1x256x256xbf16> to vector<256x256xbf16>
    %48 = arith.extf %47 : vector<256x256xbf16> to vector<256x256xf32>
    %cst_26 = arith.constant dense<0.000000e+00> : vector<8x256xf32>
    %49 = tpu.matmul %45, %48, %cst_26 {dimension_numbers = #tpu.dot_dimension_numbers<[1], [1], [0], [0], [0, 0, 1, 0], [], []>} : vector<8x256xf32>, vector<256x256xf32>, vector<8x256xf32> -> vector<8x256xf32>
    %c2_27 = arith.constant 2 : index
    %c0_28 = arith.constant 0 : index
    %50 = vector.load %arg3[%c2_27, %c0_28] : memref<8x256xf32, #tpu.memory_space<vmem>>, vector<1x256xf32>
    %51 = vector.broadcast %50 : vector<1x256xf32> to vector<8x256xf32>
    %52 = arith.mulf %49, %51 : vector<8x256xf32>
    %c4 = arith.constant 4 : index
    %c0_29 = arith.constant 0 : index
    %53 = vector.load %arg2[%c4, %c0_29] : memref<16x256xf32, #tpu.memory_space<vmem>>, vector<1x256xf32>
    %54 = vector.broadcast %53 : vector<1x256xf32> to vector<8x256xf32>
    %55 = arith.addf %52, %54 : vector<8x256xf32>
    %cst_30 = arith.constant dense<0.000000e+00> : vector<256xf32>
    %56 = vector.multi_reduction <add>, %55, %cst_30 [0] : vector<8x256xf32> to vector<256xf32>
    %57 = vector.shape_cast %56 : vector<256xf32> to vector<1x256xf32>
    %cst_31 = arith.constant 1.250000e-01 : f32
    %58 = vector.broadcast %cst_31 : f32 to vector<1x256xf32>
    %59 = arith.mulf %57, %58 : vector<1x256xf32>
    %60 = arith.mulf %55, %55 : vector<8x256xf32>
    %cst_32 = arith.constant dense<0.000000e+00> : vector<256xf32>
    %61 = vector.multi_reduction <add>, %60, %cst_32 [0] : vector<8x256xf32> to vector<256xf32>
    %62 = vector.shape_cast %61 : vector<256xf32> to vector<1x256xf32>
    %cst_33 = arith.constant 1.250000e-01 : f32
    %63 = vector.broadcast %cst_33 : f32 to vector<1x256xf32>
    %64 = arith.mulf %62, %63 : vector<1x256xf32>
    %65 = arith.mulf %59, %59 : vector<1x256xf32>
    %66 = arith.subf %64, %65 : vector<1x256xf32>
    %c5 = arith.constant 5 : index
    %c0_34 = arith.constant 0 : index
    %67 = vector.load %arg2[%c5, %c0_34] : memref<16x256xf32, #tpu.memory_space<vmem>>, vector<1x256xf32>
    %cst_35 = arith.constant 9.99999974E-6 : f32
    %68 = vector.broadcast %cst_35 : f32 to vector<1x256xf32>
    %69 = arith.addf %66, %68 : vector<1x256xf32>
    %70 = math.rsqrt %69 : vector<1x256xf32>
    %71 = arith.mulf %67, %70 : vector<1x256xf32>
    %c6 = arith.constant 6 : index
    %c0_36 = arith.constant 0 : index
    %72 = vector.load %arg2[%c6, %c0_36] : memref<16x256xf32, #tpu.memory_space<vmem>>, vector<1x256xf32>
    %73 = arith.mulf %59, %71 : vector<1x256xf32>
    %74 = arith.subf %72, %73 : vector<1x256xf32>
    %75 = vector.broadcast %71 : vector<1x256xf32> to vector<8x256xf32>
    %76 = arith.mulf %55, %75 : vector<8x256xf32>
    %77 = vector.broadcast %74 : vector<1x256xf32> to vector<8x256xf32>
    %78 = arith.addf %76, %77 : vector<8x256xf32>
    %cst_37 = arith.constant 0.000000e+00 : f32
    %79 = vector.broadcast %cst_37 : f32 to vector<8x256xf32>
    %80 = arith.maximumf %78, %79 : vector<8x256xf32>
    %c3_38 = arith.constant 3 : index
    %c0_39 = arith.constant 0 : index
    %c0_40 = arith.constant 0 : index
    %81 = vector.load %arg1[%c3_38, %c0_39, %c0_40] : memref<7x256x256xbf16, #tpu.memory_space<vmem>>, vector<1x256x256xbf16>
    %82 = vector.shape_cast %81 : vector<1x256x256xbf16> to vector<256x256xbf16>
    %83 = arith.extf %82 : vector<256x256xbf16> to vector<256x256xf32>
    %cst_41 = arith.constant dense<0.000000e+00> : vector<8x256xf32>
    %84 = tpu.matmul %80, %83, %cst_41 {dimension_numbers = #tpu.dot_dimension_numbers<[1], [1], [0], [0], [0, 0, 1, 0], [], []>} : vector<8x256xf32>, vector<256x256xf32>, vector<8x256xf32> -> vector<8x256xf32>
    %c3_42 = arith.constant 3 : index
    %c0_43 = arith.constant 0 : index
    %85 = vector.load %arg3[%c3_42, %c0_43] : memref<8x256xf32, #tpu.memory_space<vmem>>, vector<1x256xf32>
    %86 = vector.broadcast %85 : vector<1x256xf32> to vector<8x256xf32>
    %87 = arith.mulf %84, %86 : vector<8x256xf32>
    %c7 = arith.constant 7 : index
    %c0_44 = arith.constant 0 : index
    %88 = vector.load %arg2[%c7, %c0_44] : memref<16x256xf32, #tpu.memory_space<vmem>>, vector<1x256xf32>
    %89 = vector.broadcast %88 : vector<1x256xf32> to vector<8x256xf32>
    %90 = arith.addf %87, %89 : vector<8x256xf32>
    %91 = vector.extract_strided_slice %90 {offsets = [0, 128], sizes = [8, 128], strides = [1, 1]} : vector<8x256xf32> to vector<8x128xf32>
    %92 = vector.extract_strided_slice %90 {offsets = [0, 0], sizes = [8, 128], strides = [1, 1]} : vector<8x256xf32> to vector<8x128xf32>
    %93 = tpu.concatenate %91, %92 in 1 : vector<8x128xf32>, vector<8x128xf32> -> vector<8x256xf32>
    %c0_45 = arith.constant 0 : index
    %c0_46 = arith.constant 0 : index
    %c0_47 = arith.constant 0 : index
    %94 = vector.load %arg1[%c0_45, %c0_46, %c0_47] : memref<7x256x256xbf16, #tpu.memory_space<vmem>>, vector<1x256x256xbf16>
    %95 = vector.shape_cast %94 : vector<1x256x256xbf16> to vector<256x256xbf16>
    %96 = arith.extf %95 : vector<256x256xbf16> to vector<256x256xf32>
    %cst_48 = arith.constant dense<0.000000e+00> : vector<8x256xf32>
    %97 = tpu.matmul %93, %96, %cst_48 {dimension_numbers = #tpu.dot_dimension_numbers<[1], [1], [0], [0], [0, 0, 1, 0], [], []>} : vector<8x256xf32>, vector<256x256xf32>, vector<8x256xf32> -> vector<8x256xf32>
    %c0_49 = arith.constant 0 : index
    %c0_50 = arith.constant 0 : index
    %98 = vector.load %arg3[%c0_49, %c0_50] : memref<8x256xf32, #tpu.memory_space<vmem>>, vector<1x256xf32>
    %99 = vector.broadcast %98 : vector<1x256xf32> to vector<8x256xf32>
    %100 = arith.mulf %97, %99 : vector<8x256xf32>
    %c0_51 = arith.constant 0 : index
    %c0_52 = arith.constant 0 : index
    %101 = vector.load %arg2[%c0_51, %c0_52] : memref<16x256xf32, #tpu.memory_space<vmem>>, vector<1x256xf32>
    %102 = vector.broadcast %101 : vector<1x256xf32> to vector<8x256xf32>
    %103 = arith.addf %100, %102 : vector<8x256xf32>
    %cst_53 = arith.constant dense<0.000000e+00> : vector<256xf32>
    %104 = vector.multi_reduction <add>, %103, %cst_53 [0] : vector<8x256xf32> to vector<256xf32>
    %105 = vector.shape_cast %104 : vector<256xf32> to vector<1x256xf32>
    %cst_54 = arith.constant 1.250000e-01 : f32
    %106 = vector.broadcast %cst_54 : f32 to vector<1x256xf32>
    %107 = arith.mulf %105, %106 : vector<1x256xf32>
    %108 = arith.mulf %103, %103 : vector<8x256xf32>
    %cst_55 = arith.constant dense<0.000000e+00> : vector<256xf32>
    %109 = vector.multi_reduction <add>, %108, %cst_55 [0] : vector<8x256xf32> to vector<256xf32>
    %110 = vector.shape_cast %109 : vector<256xf32> to vector<1x256xf32>
    %cst_56 = arith.constant 1.250000e-01 : f32
    %111 = vector.broadcast %cst_56 : f32 to vector<1x256xf32>
    %112 = arith.mulf %110, %111 : vector<1x256xf32>
    %113 = arith.mulf %107, %107 : vector<1x256xf32>
    %114 = arith.subf %112, %113 : vector<1x256xf32>
    %c1_57 = arith.constant 1 : index
    %c0_58 = arith.constant 0 : index
    %115 = vector.load %arg2[%c1_57, %c0_58] : memref<16x256xf32, #tpu.memory_space<vmem>>, vector<1x256xf32>
    %cst_59 = arith.constant 9.99999974E-6 : f32
    %116 = vector.broadcast %cst_59 : f32 to vector<1x256xf32>
    %117 = arith.addf %114, %116 : vector<1x256xf32>
    %118 = math.rsqrt %117 : vector<1x256xf32>
    %119 = arith.mulf %115, %118 : vector<1x256xf32>
    %c2_60 = arith.constant 2 : index
    %c0_61 = arith.constant 0 : index
    %120 = vector.load %arg2[%c2_60, %c0_61] : memref<16x256xf32, #tpu.memory_space<vmem>>, vector<1x256xf32>
    %121 = arith.mulf %107, %119 : vector<1x256xf32>
    %122 = arith.subf %120, %121 : vector<1x256xf32>
    %123 = vector.broadcast %119 : vector<1x256xf32> to vector<8x256xf32>
    %124 = arith.mulf %103, %123 : vector<8x256xf32>
    %125 = vector.broadcast %122 : vector<1x256xf32> to vector<8x256xf32>
    %126 = arith.addf %124, %125 : vector<8x256xf32>
    %cst_62 = arith.constant 0.000000e+00 : f32
    %127 = vector.broadcast %cst_62 : f32 to vector<8x256xf32>
    %128 = arith.maximumf %126, %127 : vector<8x256xf32>
    %c1_63 = arith.constant 1 : index
    %c0_64 = arith.constant 0 : index
    %c0_65 = arith.constant 0 : index
    %129 = vector.load %arg1[%c1_63, %c0_64, %c0_65] : memref<7x256x256xbf16, #tpu.memory_space<vmem>>, vector<1x256x256xbf16>
    %130 = vector.shape_cast %129 : vector<1x256x256xbf16> to vector<256x256xbf16>
    %131 = arith.extf %130 : vector<256x256xbf16> to vector<256x256xf32>
    %cst_66 = arith.constant dense<0.000000e+00> : vector<8x256xf32>
    %132 = tpu.matmul %128, %131, %cst_66 {dimension_numbers = #tpu.dot_dimension_numbers<[1], [1], [0], [0], [0, 0, 1, 0], [], []>} : vector<8x256xf32>, vector<256x256xf32>, vector<8x256xf32> -> vector<8x256xf32>
    %c1_67 = arith.constant 1 : index
    %c0_68 = arith.constant 0 : index
    %133 = vector.load %arg3[%c1_67, %c0_68] : memref<8x256xf32, #tpu.memory_space<vmem>>, vector<1x256xf32>
    %134 = vector.broadcast %133 : vector<1x256xf32> to vector<8x256xf32>
    %135 = arith.mulf %132, %134 : vector<8x256xf32>
    %c3_69 = arith.constant 3 : index
    %c0_70 = arith.constant 0 : index
    %136 = vector.load %arg2[%c3_69, %c0_70] : memref<16x256xf32, #tpu.memory_space<vmem>>, vector<1x256xf32>
    %137 = vector.broadcast %136 : vector<1x256xf32> to vector<8x256xf32>
    %138 = arith.addf %135, %137 : vector<8x256xf32>
    %c2_71 = arith.constant 2 : index
    %c0_72 = arith.constant 0 : index
    %c0_73 = arith.constant 0 : index
    %139 = vector.load %arg1[%c2_71, %c0_72, %c0_73] : memref<7x256x256xbf16, #tpu.memory_space<vmem>>, vector<1x256x256xbf16>
    %140 = vector.shape_cast %139 : vector<1x256x256xbf16> to vector<256x256xbf16>
    %141 = arith.extf %140 : vector<256x256xbf16> to vector<256x256xf32>
    %cst_74 = arith.constant dense<0.000000e+00> : vector<8x256xf32>
    %142 = tpu.matmul %138, %141, %cst_74 {dimension_numbers = #tpu.dot_dimension_numbers<[1], [1], [0], [0], [0, 0, 1, 0], [], []>} : vector<8x256xf32>, vector<256x256xf32>, vector<8x256xf32> -> vector<8x256xf32>
    %c2_75 = arith.constant 2 : index
    %c0_76 = arith.constant 0 : index
    %143 = vector.load %arg3[%c2_75, %c0_76] : memref<8x256xf32, #tpu.memory_space<vmem>>, vector<1x256xf32>
    %144 = vector.broadcast %143 : vector<1x256xf32> to vector<8x256xf32>
    %145 = arith.mulf %142, %144 : vector<8x256xf32>
    %c4_77 = arith.constant 4 : index
    %c0_78 = arith.constant 0 : index
    %146 = vector.load %arg2[%c4_77, %c0_78] : memref<16x256xf32, #tpu.memory_space<vmem>>, vector<1x256xf32>
    %147 = vector.broadcast %146 : vector<1x256xf32> to vector<8x256xf32>
    %148 = arith.addf %145, %147 : vector<8x256xf32>
    %cst_79 = arith.constant dense<0.000000e+00> : vector<256xf32>
    %149 = vector.multi_reduction <add>, %148, %cst_79 [0] : vector<8x256xf32> to vector<256xf32>
    %150 = vector.shape_cast %149 : vector<256xf32> to vector<1x256xf32>
    %cst_80 = arith.constant 1.250000e-01 : f32
    %151 = vector.broadcast %cst_80 : f32 to vector<1x256xf32>
    %152 = arith.mulf %150, %151 : vector<1x256xf32>
    %153 = arith.mulf %148, %148 : vector<8x256xf32>
    %cst_81 = arith.constant dense<0.000000e+00> : vector<256xf32>
    %154 = vector.multi_reduction <add>, %153, %cst_81 [0] : vector<8x256xf32> to vector<256xf32>
    %155 = vector.shape_cast %154 : vector<256xf32> to vector<1x256xf32>
    %cst_82 = arith.constant 1.250000e-01 : f32
    %156 = vector.broadcast %cst_82 : f32 to vector<1x256xf32>
    %157 = arith.mulf %155, %156 : vector<1x256xf32>
    %158 = arith.mulf %152, %152 : vector<1x256xf32>
    %159 = arith.subf %157, %158 : vector<1x256xf32>
    %c5_83 = arith.constant 5 : index
    %c0_84 = arith.constant 0 : index
    %160 = vector.load %arg2[%c5_83, %c0_84] : memref<16x256xf32, #tpu.memory_space<vmem>>, vector<1x256xf32>
    %cst_85 = arith.constant 9.99999974E-6 : f32
    %161 = vector.broadcast %cst_85 : f32 to vector<1x256xf32>
    %162 = arith.addf %159, %161 : vector<1x256xf32>
    %163 = math.rsqrt %162 : vector<1x256xf32>
    %164 = arith.mulf %160, %163 : vector<1x256xf32>
    %c6_86 = arith.constant 6 : index
    %c0_87 = arith.constant 0 : index
    %165 = vector.load %arg2[%c6_86, %c0_87] : memref<16x256xf32, #tpu.memory_space<vmem>>, vector<1x256xf32>
    %166 = arith.mulf %152, %164 : vector<1x256xf32>
    %167 = arith.subf %165, %166 : vector<1x256xf32>
    %168 = vector.broadcast %164 : vector<1x256xf32> to vector<8x256xf32>
    %169 = arith.mulf %148, %168 : vector<8x256xf32>
    %170 = vector.broadcast %167 : vector<1x256xf32> to vector<8x256xf32>
    %171 = arith.addf %169, %170 : vector<8x256xf32>
    %cst_88 = arith.constant 0.000000e+00 : f32
    %172 = vector.broadcast %cst_88 : f32 to vector<8x256xf32>
    %173 = arith.maximumf %171, %172 : vector<8x256xf32>
    %c3_89 = arith.constant 3 : index
    %c0_90 = arith.constant 0 : index
    %c0_91 = arith.constant 0 : index
    %174 = vector.load %arg1[%c3_89, %c0_90, %c0_91] : memref<7x256x256xbf16, #tpu.memory_space<vmem>>, vector<1x256x256xbf16>
    %175 = vector.shape_cast %174 : vector<1x256x256xbf16> to vector<256x256xbf16>
    %176 = arith.extf %175 : vector<256x256xbf16> to vector<256x256xf32>
    %cst_92 = arith.constant dense<0.000000e+00> : vector<8x256xf32>
    %177 = tpu.matmul %173, %176, %cst_92 {dimension_numbers = #tpu.dot_dimension_numbers<[1], [1], [0], [0], [0, 0, 1, 0], [], []>} : vector<8x256xf32>, vector<256x256xf32>, vector<8x256xf32> -> vector<8x256xf32>
    %c3_93 = arith.constant 3 : index
    %c0_94 = arith.constant 0 : index
    %178 = vector.load %arg3[%c3_93, %c0_94] : memref<8x256xf32, #tpu.memory_space<vmem>>, vector<1x256xf32>
    %179 = vector.broadcast %178 : vector<1x256xf32> to vector<8x256xf32>
    %180 = arith.mulf %177, %179 : vector<8x256xf32>
    %c7_95 = arith.constant 7 : index
    %c0_96 = arith.constant 0 : index
    %181 = vector.load %arg2[%c7_95, %c0_96] : memref<16x256xf32, #tpu.memory_space<vmem>>, vector<1x256xf32>
    %182 = vector.broadcast %181 : vector<1x256xf32> to vector<8x256xf32>
    %183 = arith.addf %180, %182 : vector<8x256xf32>
    %c4_97 = arith.constant 4 : index
    %c0_98 = arith.constant 0 : index
    %c0_99 = arith.constant 0 : index
    %184 = vector.load %arg1[%c4_97, %c0_98, %c0_99] : memref<7x256x256xbf16, #tpu.memory_space<vmem>>, vector<1x256x256xbf16>
    %185 = vector.shape_cast %184 : vector<1x256x256xbf16> to vector<256x256xbf16>
    %186 = arith.extf %185 : vector<256x256xbf16> to vector<256x256xf32>
    %cst_100 = arith.constant dense<0.000000e+00> : vector<8x256xf32>
    %187 = tpu.matmul %93, %186, %cst_100 {dimension_numbers = #tpu.dot_dimension_numbers<[1], [1], [0], [0], [0, 0, 1, 0], [], []>} : vector<8x256xf32>, vector<256x256xf32>, vector<8x256xf32> -> vector<8x256xf32>
    %c4_101 = arith.constant 4 : index
    %c0_102 = arith.constant 0 : index
    %188 = vector.load %arg3[%c4_101, %c0_102] : memref<8x256xf32, #tpu.memory_space<vmem>>, vector<1x256xf32>
    %189 = vector.broadcast %188 : vector<1x256xf32> to vector<8x256xf32>
    %190 = arith.mulf %187, %189 : vector<8x256xf32>
    %c8 = arith.constant 8 : index
    %c0_103 = arith.constant 0 : index
    %191 = vector.load %arg2[%c8, %c0_103] : memref<16x256xf32, #tpu.memory_space<vmem>>, vector<1x256xf32>
    %192 = vector.broadcast %191 : vector<1x256xf32> to vector<8x256xf32>
    %193 = arith.addf %190, %192 : vector<8x256xf32>
    %cst_104 = arith.constant dense<0.000000e+00> : vector<256xf32>
    %194 = vector.multi_reduction <add>, %193, %cst_104 [0] : vector<8x256xf32> to vector<256xf32>
    %195 = vector.shape_cast %194 : vector<256xf32> to vector<1x256xf32>
    %cst_105 = arith.constant 1.250000e-01 : f32
    %196 = vector.broadcast %cst_105 : f32 to vector<1x256xf32>
    %197 = arith.mulf %195, %196 : vector<1x256xf32>
    %198 = arith.mulf %193, %193 : vector<8x256xf32>
    %cst_106 = arith.constant dense<0.000000e+00> : vector<256xf32>
    %199 = vector.multi_reduction <add>, %198, %cst_106 [0] : vector<8x256xf32> to vector<256xf32>
    %200 = vector.shape_cast %199 : vector<256xf32> to vector<1x256xf32>
    %cst_107 = arith.constant 1.250000e-01 : f32
    %201 = vector.broadcast %cst_107 : f32 to vector<1x256xf32>
    %202 = arith.mulf %200, %201 : vector<1x256xf32>
    %203 = arith.mulf %197, %197 : vector<1x256xf32>
    %204 = arith.subf %202, %203 : vector<1x256xf32>
    %c9 = arith.constant 9 : index
    %c0_108 = arith.constant 0 : index
    %205 = vector.load %arg2[%c9, %c0_108] : memref<16x256xf32, #tpu.memory_space<vmem>>, vector<1x256xf32>
    %cst_109 = arith.constant 9.99999974E-6 : f32
    %206 = vector.broadcast %cst_109 : f32 to vector<1x256xf32>
    %207 = arith.addf %204, %206 : vector<1x256xf32>
    %208 = math.rsqrt %207 : vector<1x256xf32>
    %209 = arith.mulf %205, %208 : vector<1x256xf32>
    %c10 = arith.constant 10 : index
    %c0_110 = arith.constant 0 : index
    %210 = vector.load %arg2[%c10, %c0_110] : memref<16x256xf32, #tpu.memory_space<vmem>>, vector<1x256xf32>
    %211 = arith.mulf %197, %209 : vector<1x256xf32>
    %212 = arith.subf %210, %211 : vector<1x256xf32>
    %213 = vector.broadcast %209 : vector<1x256xf32> to vector<8x256xf32>
    %214 = arith.mulf %193, %213 : vector<8x256xf32>
    %215 = vector.broadcast %212 : vector<1x256xf32> to vector<8x256xf32>
    %216 = arith.addf %214, %215 : vector<8x256xf32>
    %cst_111 = arith.constant 0.000000e+00 : f32
    %217 = vector.broadcast %cst_111 : f32 to vector<8x256xf32>
    %218 = arith.maximumf %216, %217 : vector<8x256xf32>
    %c5_112 = arith.constant 5 : index
    %c0_113 = arith.constant 0 : index
    %c0_114 = arith.constant 0 : index
    %219 = vector.load %arg1[%c5_112, %c0_113, %c0_114] : memref<7x256x256xbf16, #tpu.memory_space<vmem>>, vector<1x256x256xbf16>
    %220 = vector.shape_cast %219 : vector<1x256x256xbf16> to vector<256x256xbf16>
    %221 = arith.extf %220 : vector<256x256xbf16> to vector<256x256xf32>
    %cst_115 = arith.constant dense<0.000000e+00> : vector<8x256xf32>
    %222 = tpu.matmul %218, %221, %cst_115 {dimension_numbers = #tpu.dot_dimension_numbers<[1], [1], [0], [0], [0, 0, 1, 0], [], []>} : vector<8x256xf32>, vector<256x256xf32>, vector<8x256xf32> -> vector<8x256xf32>
    %c5_116 = arith.constant 5 : index
    %c0_117 = arith.constant 0 : index
    %223 = vector.load %arg3[%c5_116, %c0_117] : memref<8x256xf32, #tpu.memory_space<vmem>>, vector<1x256xf32>
    %224 = vector.broadcast %223 : vector<1x256xf32> to vector<8x256xf32>
    %225 = arith.mulf %222, %224 : vector<8x256xf32>
    %c11 = arith.constant 11 : index
    %c0_118 = arith.constant 0 : index
    %226 = vector.load %arg2[%c11, %c0_118] : memref<16x256xf32, #tpu.memory_space<vmem>>, vector<1x256xf32>
    %227 = vector.broadcast %226 : vector<1x256xf32> to vector<8x256xf32>
    %228 = arith.addf %225, %227 : vector<8x256xf32>
    %cst_119 = arith.constant dense<0.000000e+00> : vector<256xf32>
    %229 = vector.multi_reduction <add>, %228, %cst_119 [0] : vector<8x256xf32> to vector<256xf32>
    %230 = vector.shape_cast %229 : vector<256xf32> to vector<1x256xf32>
    %cst_120 = arith.constant 1.250000e-01 : f32
    %231 = vector.broadcast %cst_120 : f32 to vector<1x256xf32>
    %232 = arith.mulf %230, %231 : vector<1x256xf32>
    %233 = arith.mulf %228, %228 : vector<8x256xf32>
    %cst_121 = arith.constant dense<0.000000e+00> : vector<256xf32>
    %234 = vector.multi_reduction <add>, %233, %cst_121 [0] : vector<8x256xf32> to vector<256xf32>
    %235 = vector.shape_cast %234 : vector<256xf32> to vector<1x256xf32>
    %cst_122 = arith.constant 1.250000e-01 : f32
    %236 = vector.broadcast %cst_122 : f32 to vector<1x256xf32>
    %237 = arith.mulf %235, %236 : vector<1x256xf32>
    %238 = arith.mulf %232, %232 : vector<1x256xf32>
    %239 = arith.subf %237, %238 : vector<1x256xf32>
    %c12 = arith.constant 12 : index
    %c0_123 = arith.constant 0 : index
    %240 = vector.load %arg2[%c12, %c0_123] : memref<16x256xf32, #tpu.memory_space<vmem>>, vector<1x256xf32>
    %cst_124 = arith.constant 9.99999974E-6 : f32
    %241 = vector.broadcast %cst_124 : f32 to vector<1x256xf32>
    %242 = arith.addf %239, %241 : vector<1x256xf32>
    %243 = math.rsqrt %242 : vector<1x256xf32>
    %244 = arith.mulf %240, %243 : vector<1x256xf32>
    %c13 = arith.constant 13 : index
    %c0_125 = arith.constant 0 : index
    %245 = vector.load %arg2[%c13, %c0_125] : memref<16x256xf32, #tpu.memory_space<vmem>>, vector<1x256xf32>
    %246 = arith.mulf %232, %244 : vector<1x256xf32>
    %247 = arith.subf %245, %246 : vector<1x256xf32>
    %248 = vector.broadcast %244 : vector<1x256xf32> to vector<8x256xf32>
    %249 = arith.mulf %228, %248 : vector<8x256xf32>
    %250 = vector.broadcast %247 : vector<1x256xf32> to vector<8x256xf32>
    %251 = arith.addf %249, %250 : vector<8x256xf32>
    %cst_126 = arith.constant 0.000000e+00 : f32
    %252 = vector.broadcast %cst_126 : f32 to vector<8x256xf32>
    %253 = arith.maximumf %251, %252 : vector<8x256xf32>
    %c6_127 = arith.constant 6 : index
    %c0_128 = arith.constant 0 : index
    %c0_129 = arith.constant 0 : index
    %254 = vector.load %arg1[%c6_127, %c0_128, %c0_129] : memref<7x256x256xbf16, #tpu.memory_space<vmem>>, vector<1x256x256xbf16>
    %255 = vector.shape_cast %254 : vector<1x256x256xbf16> to vector<256x256xbf16>
    %256 = arith.extf %255 : vector<256x256xbf16> to vector<256x256xf32>
    %cst_130 = arith.constant dense<0.000000e+00> : vector<8x256xf32>
    %257 = tpu.matmul %253, %256, %cst_130 {dimension_numbers = #tpu.dot_dimension_numbers<[1], [1], [0], [0], [0, 0, 1, 0], [], []>} : vector<8x256xf32>, vector<256x256xf32>, vector<8x256xf32> -> vector<8x256xf32>
    %c6_131 = arith.constant 6 : index
    %c0_132 = arith.constant 0 : index
    %258 = vector.load %arg3[%c6_131, %c0_132] : memref<8x256xf32, #tpu.memory_space<vmem>>, vector<1x256xf32>
    %259 = vector.broadcast %258 : vector<1x256xf32> to vector<8x256xf32>
    %260 = arith.mulf %257, %259 : vector<8x256xf32>
    %c14 = arith.constant 14 : index
    %c0_133 = arith.constant 0 : index
    %261 = vector.load %arg2[%c14, %c0_133] : memref<16x256xf32, #tpu.memory_space<vmem>>, vector<1x256xf32>
    %262 = vector.broadcast %261 : vector<1x256xf32> to vector<8x256xf32>
    %263 = arith.addf %260, %262 : vector<8x256xf32>
    %c0_134 = arith.constant 0 : index
    %c0_135 = arith.constant 0 : index
    %c0_136 = arith.constant 0 : index
    %264 = vector.load %arg4[%c0_134, %c0_135, %c0_136] : memref<3x8x256xf32, #tpu.memory_space<vmem>>, vector<1x8x256xf32>
    %265 = vector.shape_cast %264 : vector<1x8x256xf32> to vector<8x256xf32>
    %266 = vector.shape_cast %90 : vector<8x256xf32> to vector<1x8x256xf32>
    tpu.vector_store %arg4[%c0_134, %c0_135, %c0_136], %266 {strides = array<i32>} : memref<3x8x256xf32, #tpu.memory_space<vmem>>, vector<1x8x256xf32>,
    %c1_137 = arith.constant 1 : index
    %c0_138 = arith.constant 0 : index
    %c0_139 = arith.constant 0 : index
    %267 = vector.load %arg4[%c1_137, %c0_138, %c0_139] : memref<3x8x256xf32, #tpu.memory_space<vmem>>, vector<1x8x256xf32>
    %268 = vector.shape_cast %267 : vector<1x8x256xf32> to vector<8x256xf32>
    %269 = vector.shape_cast %183 : vector<8x256xf32> to vector<1x8x256xf32>
    tpu.vector_store %arg4[%c1_137, %c0_138, %c0_139], %269 {strides = array<i32>} : memref<3x8x256xf32, #tpu.memory_space<vmem>>, vector<1x8x256xf32>,
    %c2_140 = arith.constant 2 : index
    %c0_141 = arith.constant 0 : index
    %c0_142 = arith.constant 0 : index
    %270 = vector.load %arg4[%c2_140, %c0_141, %c0_142] : memref<3x8x256xf32, #tpu.memory_space<vmem>>, vector<1x8x256xf32>
    %271 = vector.shape_cast %270 : vector<1x8x256xf32> to vector<8x256xf32>
    %272 = vector.shape_cast %263 : vector<8x256xf32> to vector<1x8x256xf32>
    tpu.vector_store %arg4[%c2_140, %c0_141, %c0_142], %272 {strides = array<i32>} : memref<3x8x256xf32, #tpu.memory_space<vmem>>, vector<1x8x256xf32>,
    return
  }
}

</mosaic_0001>

<llo_original>
// kernel: cyclegan_forward.1
$region0: #{cyclegan_forward.1}
  #allocation0 [shape = 'u32[]', space=smem, size = 0x4, offset = 0x4, fixed_abs, tag = 'smem constant byte address 0x4 - core index']
  #allocation1 [shape = 'u32[144,128]{1,0:T(1,128)}', space=vmem, size = 0x12000, scoped, tag = 'internal scratch']
  %s0 = inlined_call_operand.vmem [shape: f32[8,256], index: 0, kind: input, shape index: {}]
  %s1 = inlined_call_operand.vmem [shape: bf16[7,256,256], index: 1, kind: input, shape index: {}]
  %s2 = inlined_call_operand.vmem [shape: f32[16,256], index: 2, kind: input, shape index: {}]
  %s3 = inlined_call_operand.vmem [shape: f32[8,256], index: 3, kind: input, shape index: {}]
  %s4 = inlined_call_operand.vmem [shape: f32[3,8,256], index: 4, kind: output, shape index: {}]
  %s5 = sld [smem:[#allocation0]]
  $region26: #{cyclegan_forward.1} parent=0
    _
  %s7 = ssub.s32 1, %s5
  %s8 = scalar_select 0, %s7, %s5
  // Predicated region
  $region2: #{cyclegan_forward.1} parent=0 // pred_check
    _
  $region3: #{cyclegan_forward.1} parent=0 // pred_check_branch
    %10 = sbr.rel (0) target = $region5
  $region4: #{cyclegan_forward.1} parent=0 // pred_region
    _
  $region5: #{cyclegan_forward.1} parent=0 // pred_fallthru
    _
  // Predicated region
  $region6: #{cyclegan_forward.1} parent=0 // pred_check
    _
  $region7: #{cyclegan_forward.1} parent=0 // pred_check_branch
    %12 = sbr.rel (0) target = $region9
  $region8: #{cyclegan_forward.1} parent=0 // pred_region
    _
  $region9: #{cyclegan_forward.1} parent=0 // pred_fallthru
    _
  // Predicated region
  $region10: #{cyclegan_forward.1} parent=0 // pred_check
    _
  $region11: #{cyclegan_forward.1} parent=0 // pred_check_branch
    %14 = sbr.rel (0) target = $region13
  $region12: #{cyclegan_forward.1} parent=0 // pred_region
    _
  $region13: #{cyclegan_forward.1} parent=0 // pred_fallthru
    _
  // Predicated region
  $region14: #{cyclegan_forward.1} parent=0 // pred_check
    _
  $region15: #{cyclegan_forward.1} parent=0 // pred_check_branch
    %16 = sbr.rel (0) target = $region17
  $region16: #{cyclegan_forward.1} parent=0 // pred_region
    _
  $region17: #{cyclegan_forward.1} parent=0 // pred_fallthru
    _
  %v17 = vld [vmem:[%s0] sm:$0xff]
  %v18 = vld [vmem:[%s0 + $0x8] sm:$0xff]
  %v19 = vld [vmem:[%s1] sm:$0xff]
  %v20 = vld [vmem:[%s1 + $0x8] sm:$0xff]
  %v21 = vld [vmem:[%s1 + $0x10] sm:$0xff]
  %v22 = vld [vmem:[%s1 + $0x18] sm:$0xff]
  %v23 = vld [vmem:[%s1 + $0x20] sm:$0xff]
  %v24 = vld [vmem:[%s1 + $0x28] sm:$0xff]
  %v25 = vld [vmem:[%s1 + $0x30] sm:$0xff]
  %v26 = vld [vmem:[%s1 + $0x38] sm:$0xff]
  %v27 = vld [vmem:[%s1 + $0x40] sm:$0xff]
  %v28 = vld [vmem:[%s1 + $0x48] sm:$0xff]
  %v29 = vld [vmem:[%s1 + $0x50] sm:$0xff]
  %v30 = vld [vmem:[%s1 + $0x58] sm:$0xff]
  %v31 = vld [vmem:[%s1 + $0x60] sm:$0xff]
  %v32 = vld [vmem:[%s1 + $0x68] sm:$0xff]
  %v33 = vld [vmem:[%s1 + $0x70] sm:$0xff]
  %v34 = vld [vmem:[%s1 + $0x78] sm:$0xff]
  %v35 = vld [vmem:[%s1 + $0x80] sm:$0xff]
  %v36 = vld [vmem:[%s1 + $0x88] sm:$0xff]
  %v37 = vld [vmem:[%s1 + $0x90] sm:$0xff]
  %v38 = vld [vmem:[%s1 + $0x98] sm:$0xff]
  %v39 = vld [vmem:[%s1 + $0xa0] sm:$0xff]
  %v40 = vld [vmem:[%s1 + $0xa8] sm:$0xff]
  %v41 = vld [vmem:[%s1 + $0xb0] sm:$0xff]
  %v42 = vld [vmem:[%s1 + $0xb8] sm:$0xff]
  %v43 = vld [vmem:[%s1 + $0xc0] sm:$0xff]
  %v44 = vld [vmem:[%s1 + $0xc8] sm:$0xff]
  %v45 = vld [vmem:[%s1 + $0xd0] sm:$0xff]
  %v46 = vld [vmem:[%s1 + $0xd8] sm:$0xff]
  %v47 = vld [vmem:[%s1 + $0xe0] sm:$0xff]
  %v48 = vld [vmem:[%s1 + $0xe8] sm:$0xff]
  %v49 = vld [vmem:[%s1 + $0xf0] sm:$0xff]
  %v50 = vld [vmem:[%s1 + $0xf8] sm:$0xff]
  %v51 = vunpack.c.l.bf16 %v19
  %v52 = vunpack.c.h.bf16 %v19
  %v53 = vunpack.c.l.bf16 %v20
  %v54 = vunpack.c.h.bf16 %v20
  %v55 = vunpack.c.l.bf16 %v21
  %v56 = vunpack.c.h.bf16 %v21
  %v57 = vunpack.c.l.bf16 %v22
  %v58 = vunpack.c.h.bf16 %v22
  %v59 = vunpack.c.l.bf16 %v23
  %v60 = vunpack.c.h.bf16 %v23
  %v61 = vunpack.c.l.bf16 %v24
  %v62 = vunpack.c.h.bf16 %v24
  %v63 = vunpack.c.l.bf16 %v25
  %v64 = vunpack.c.h.bf16 %v25
  %v65 = vunpack.c.l.bf16 %v26
  %v66 = vunpack.c.h.bf16 %v26
  %v67 = vunpack.c.l.bf16 %v27
  %v68 = vunpack.c.h.bf16 %v27
  %v69 = vunpack.c.l.bf16 %v28
  %v70 = vunpack.c.h.bf16 %v28
  %v71 = vunpack.c.l.bf16 %v29
  %v72 = vunpack.c.h.bf16 %v29
  %v73 = vunpack.c.l.bf16 %v30
  %v74 = vunpack.c.h.bf16 %v30
  %v75 = vunpack.c.l.bf16 %v31
  %v76 = vunpack.c.h.bf16 %v31
  %v77 = vunpack.c.l.bf16 %v32
  %v78 = vunpack.c.h.bf16 %v32
  %v79 = vunpack.c.l.bf16 %v33
  %v80 = vunpack.c.h.bf16 %v33
  %v81 = vunpack.c.l.bf16 %v34
  %v82 = vunpack.c.h.bf16 %v34
  %v83 = vunpack.c.l.bf16 %v35
  %v84 = vunpack.c.h.bf16 %v35
  %v85 = vunpack.c.l.bf16 %v36
  %v86 = vunpack.c.h.bf16 %v36
  %v87 = vunpack.c.l.bf16 %v37
  %v88 = vunpack.c.h.bf16 %v37
  %v89 = vunpack.c.l.bf16 %v38
  %v90 = vunpack.c.h.bf16 %v38
  %v91 = vunpack.c.l.bf16 %v39
  %v92 = vunpack.c.h.bf16 %v39
  %v93 = vunpack.c.l.bf16 %v40
  %v94 = vunpack.c.h.bf16 %v40
  %v95 = vunpack.c.l.bf16 %v41
  %v96 = vunpack.c.h.bf16 %v41
  %v97 = vunpack.c.l.bf16 %v42
  %v98 = vunpack.c.h.bf16 %v42
  %v99 = vunpack.c.l.bf16 %v43
  %v100 = vunpack.c.h.bf16 %v43
  %v101 = vunpack.c.l.bf16 %v44
  %v102 = vunpack.c.h.bf16 %v44
  %v103 = vunpack.c.l.bf16 %v45
  %v104 = vunpack.c.h.bf16 %v45
  %v105 = vunpack.c.l.bf16 %v46
  %v106 = vunpack.c.h.bf16 %v46
  %v107 = vunpack.c.l.bf16 %v47
  %v108 = vunpack.c.h.bf16 %v47
  %v109 = vunpack.c.l.bf16 %v48
  %v110 = vunpack.c.h.bf16 %v48
  %v111 = vunpack.c.l.bf16 %v49
  %v112 = vunpack.c.h.bf16 %v49
  %v113 = vunpack.c.l.bf16 %v50
  %v114 = vunpack.c.h.bf16 %v50
  %115 = vmatprep.subr.mxu0 %v82
  %116 = vmatpush1.xpose.msra.mxu0 %v81
  %117 = vmatprep.subr.mxu0 %v80
  %118 = vmatpush1.xpose.msra.mxu0 %v79
  %119 = vmatprep.subr.mxu0 %v78
  %120 = vmatpush1.xpose.msra.mxu0 %v77
  %121 = vmatprep.subr.mxu0 %v76
  %122 = vmatpush1.xpose.msra.mxu0 %v75
  %123 = vmatprep.subr.mxu0 %v74
  %124 = vmatpush1.xpose.msra.mxu0 %v73
  %125 = vmatprep.subr.mxu0 %v72
  %126 = vmatpush1.xpose.msra.mxu0 %v71
  %127 = vmatprep.subr.mxu0 %v70
  %128 = vmatpush1.xpose.msra.mxu0 %v69
  %129 = vmatprep.subr.mxu0 %v68
  %130 = vmatpush1.xpose.msra.mxu0 %v67
  %131 = vmatprep.subr.mxu0 %v66
  %132 = vmatpush1.xpose.msra.mxu0 %v65
  %133 = vmatprep.subr.mxu0 %v64
  %134 = vmatpush1.xpose.msra.mxu0 %v63
  %135 = vmatprep.subr.mxu0 %v62
  %136 = vmatpush1.xpose.msra.mxu0 %v61
  %137 = vmatprep.subr.mxu0 %v60
  %138 = vmatpush1.xpose.msra.mxu0 %v59
  %139 = vmatprep.subr.mxu0 %v58
  %140 = vmatpush1.xpose.msra.mxu0 %v57
  %141 = vmatprep.subr.mxu0 %v56
  %142 = vmatpush1.xpose.msra.mxu0 %v55
  %143 = vmatprep.subr.mxu0 %v54
  %144 = vmatpush1.xpose.msra.mxu0 %v53
  %145 = vmatprep.subr.mxu0 %v52
  %146 = vmatpush1.xpose.msra.mxu0 %v51
  %147 = vmatprep.subr.mxu0 %v114
  %148 = vmatpush2.xpose.msra.mxu0 %v113
  %149 = vmatprep.subr.mxu0 %v112
  %150 = vmatpush2.xpose.msra.mxu0 %v111
  %151 = vmatprep.subr.mxu0 %v110
  %152 = vmatpush2.xpose.msra.mxu0 %v109
  %153 = vmatprep.subr.mxu0 %v108
  %154 = vmatpush2.xpose.msra.mxu0 %v107
  %155 = vmatprep.subr.mxu0 %v106
  %156 = vmatpush2.xpose.msra.mxu0 %v105
  %157 = vmatprep.subr.mxu0 %v104
  %158 = vmatpush2.xpose.msra.mxu0 %v103
  %159 = vmatprep.subr.mxu0 %v102
  %160 = vmatpush2.xpose.msra.mxu0 %v101
  %161 = vmatprep.subr.mxu0 %v100
  %162 = vmatpush2.xpose.msra.mxu0 %v99
  %163 = vmatprep.subr.mxu0 %v98
  %164 = vmatpush2.xpose.msra.mxu0 %v97
  %165 = vmatprep.subr.mxu0 %v96
  %166 = vmatpush2.xpose.msra.mxu0 %v95
  %167 = vmatprep.subr.mxu0 %v94
  %168 = vmatpush2.xpose.msra.mxu0 %v93
  %169 = vmatprep.subr.mxu0 %v92
  %170 = vmatpush2.xpose.msra.mxu0 %v91
  %171 = vmatprep.subr.mxu0 %v90
  %172 = vmatpush2.xpose.msra.mxu0 %v89
  %173 = vmatprep.subr.mxu0 %v88
  %174 = vmatpush2.xpose.msra.mxu0 %v87
  %175 = vmatprep.subr.mxu0 %v86
  %176 = vmatpush2.xpose.msra.mxu0 %v85
  %177 = vmatprep.subr.mxu0 %v84
  %178 = vmatpush2.xpose.msra.mxu0 %v83
  %179 = vmatprep.mubr.f32.mxu0 %v18
  %180 = vmatmul.mubr.f32.gmra.mxu0 %v17
  %v181 = vpop.f32.mrf.mxu0
  %v182 = vadd.f32 0.0, %v181
  %v183 = vpop.f32.mrf.mxu0
  %v184 = vadd.f32 0.0, %v183
  %185 = vdwg.mxu0
  %v186 = vld [vmem:[%s3] ss:$8 sm:$0x3]
  %v188 = vlaneseq
  %v189 = vshrl.u32 %v188, 7
  %v190 = vsub.s32 0, %v189
  %v191 = vrot.slane %v186, %v190
  %v192 = vlaneseq
  %v193 = vshrl.u32 %v192, 7
  %v194 = vsub.s32 1, %v193
  %v195 = vrot.slane %v186, %v194
  %v198 = vmul.f32 %v182, %v191
  %v199 = vmul.f32 %v184, %v195
  %v200 = vld [vmem:[%s2] ss:$8 sm:$0x3]
  %v202 = vlaneseq
  %v203 = vshrl.u32 %v202, 7
  %v204 = vsub.s32 0, %v203
  %v205 = vrot.slane %v200, %v204
  %v206 = vlaneseq
  %v207 = vshrl.u32 %v206, 7
  %v208 = vsub.s32 1, %v207
  %v209 = vrot.slane %v200, %v208
  %v212 = vadd.f32 %v198, %v205
  %v213 = vadd.f32 %v199, %v209
  %v214 = vrot.slane %v212, 4
  %v215 = vadd.f32 %v212, %v214
  %v216 = vrot.slane %v215, 2
  %v217 = vadd.f32 %v215, %v216
  %v218 = vrot.slane %v217, 1
  %v219 = vadd.f32 %v217, %v218
  %v220 = vrot.slane %v213, 4
  %v221 = vadd.f32 %v213, %v220
  %v222 = vrot.slane %v221, 2
  %v223 = vadd.f32 %v221, %v222
  %v224 = vrot.slane %v223, 1
  %v225 = vadd.f32 %v223, %v224
  %v226 = vmul.f32 %v219, 0.125
  %v227 = vmul.f32 %v225, 0.125
  %v228 = vmul.f32 %v212, %v212
  %v229 = vmul.f32 %v213, %v213
  %v230 = vrot.slane %v228, 4
  %v231 = vadd.f32 %v228, %v230
  %v232 = vrot.slane %v231, 2
  %v233 = vadd.f32 %v231, %v232
  %v234 = vrot.slane %v233, 1
  %v235 = vadd.f32 %v233, %v234
  %v236 = vrot.slane %v229, 4
  %v237 = vadd.f32 %v229, %v236
  %v238 = vrot.slane %v237, 2
  %v239 = vadd.f32 %v237, %v238
  %v240 = vrot.slane %v239, 1
  %v241 = vadd.f32 %v239, %v240
  %v242 = vmul.f32 %v235, 0.125
  %v243 = vmul.f32 %v241, 0.125
  %v244 = vmul.f32 %v226, %v226
  %v245 = vmul.f32 %v227, %v227
  %v246 = vsub.f32 %v242, %v244
  %v247 = vsub.f32 %v243, %v245
  %s248 = scalar_lea.vmem %s2, 1
  %v249 = vld [vmem:[%s248] ss:$8 sm:$0x3]
  %v250 = vadd.f32 %v246, 1e-05
  %v251 = vadd.f32 %v247, 1e-05
  %v252 = vrsqrt.pop %v250
  %v253 = vrsqrt.pop %v251
  %v256 = vcombine.low %v252, %v253
  %v258 = vunpack.c.l.s4 1966171168
  %v259 = vunpack.c.0.s8 %v258
  %v260 = vlaneseq
  %v261 = vshrl.u32 %v260, 7
  %v262 = vsub.s32 %v259, %v261
  %v263 = vrot.slane %v256, %v262
  %v265 = vunpack.c.l.s4 1966171168
  %v266 = vunpack.c.0.s8 %v265
  %v267 = vlaneseq
  %v268 = vshrl.u32 %v267, 7
  %v269 = vsub.s32 %v266, %v268
  %v270 = vrot.slane %v263, %v269
  %v272 = vmul.f32 %v249, %v270
  %s273 = scalar_lea.vmem %s2, 2
  %v274 = vld [vmem:[%s273] ss:$8 sm:$0x3]
  %v276 = vlaneseq
  %v277 = vshrl.u32 %v276, 7
  %v278 = vsub.s32 0, %v277
  %v279 = vrot.slane %v272, %v278
  %v280 = vlaneseq
  %v281 = vshrl.u32 %v280, 7
  %v282 = vsub.s32 1, %v281
  %v283 = vrot.slane %v272, %v282
  %v286 = vmul.f32 %v226, %v279
  %v287 = vmul.f32 %v227, %v283
  %v290 = vcombine.low %v286, %v287
  %v292 = vunpack.c.l.s4 1966171168
  %v293 = vunpack.c.0.s8 %v292
  %v294 = vlaneseq
  %v295 = vshrl.u32 %v294, 7
  %v296 = vsub.s32 %v293, %v295
  %v297 = vrot.slane %v290, %v296
  %v299 = vunpack.c.l.s4 1966171168
  %v300 = vunpack.c.0.s8 %v299
  %v301 = vlaneseq
  %v302 = vshrl.u32 %v301, 7
  %v303 = vsub.s32 %v300, %v302
  %v304 = vrot.slane %v297, %v303
  %v306 = vsub.f32 %v274, %v304
  %v307 = vmul.f32 %v212, %v279
  %v308 = vmul.f32 %v213, %v283
  %v310 = vlaneseq
  %v311 = vshrl.u32 %v310, 7
  %v312 = vsub.s32 0, %v311
  %v313 = vrot.slane %v306, %v312
  %v314 = vlaneseq
  %v315 = vshrl.u32 %v314, 7
  %v316 = vsub.s32 1, %v315
  %v317 = vrot.slane %v306, %v316
  %v320 = vadd.f32 %v307, %v313
  %v321 = vadd.f32 %v308, %v317
  %v322 = vmax.f32 %v320, 0.0
  %v323 = vmax.f32 %v321, 0.0
  %s324 = scalar_lea.vmem %s1, 256
  %v325 = vld [vmem:[%s324] sm:$0xff]
  %v326 = vld [vmem:[%s324 + $0x8] sm:$0xff]
  %v327 = vld [vmem:[%s324 + $0x10] sm:$0xff]
  %v328 = vld [vmem:[%s324 + $0x18] sm:$0xff]
  %v329 = vld [vmem:[%s324 + $0x20] sm:$0xff]
  %v330 = vld [vmem:[%s324 + $0x28] sm:$0xff]
  %v331 = vld [vmem:[%s324 + $0x30] sm:$0xff]
  %v332 = vld [vmem:[%s324 + $0x38] sm:$0xff]
  %v333 = vld [vmem:[%s324 + $0x40] sm:$0xff]
  %v334 = vld [vmem:[%s324 + $0x48] sm:$0xff]
  %v335 = vld [vmem:[%s324 + $0x50] sm:$0xff]
  %v336 = vld [vmem:[%s324 + $0x58] sm:$0xff]
  %v337 = vld [vmem:[%s324 + $0x60] sm:$0xff]
  %v338 = vld [vmem:[%s324 + $0x68] sm:$0xff]
  %v339 = vld [vmem:[%s324 + $0x70] sm:$0xff]
  %v340 = vld [vmem:[%s324 + $0x78] sm:$0xff]
  %v341 = vld [vmem:[%s324 + $0x80] sm:$0xff]
  %v342 = vld [vmem:[%s324 + $0x88] sm:$0xff]
  %v343 = vld [vmem:[%s324 + $0x90] sm:$0xff]
  %v344 = vld [vmem:[%s324 + $0x98] sm:$0xff]
  %v345 = vld [vmem:[%s324 + $0xa0] sm:$0xff]
  %v346 = vld [vmem:[%s324 + $0xa8] sm:$0xff]
  %v347 = vld [vmem:[%s324 + $0xb0] sm:$0xff]
  %v348 = vld [vmem:[%s324 + $0xb8] sm:$0xff]
  %v349 = vld [vmem:[%s324 + $0xc0] sm:$0xff]
  %v350 = vld [vmem:[%s324 + $0xc8] sm:$0xff]
  %v351 = vld [vmem:[%s324 + $0xd0] sm:$0xff]
  %v352 = vld [vmem:[%s324 + $0xd8] sm:$0xff]
  %v353 = vld [vmem:[%s324 + $0xe0] sm:$0xff]
  %v354 = vld [vmem:[%s324 + $0xe8] sm:$0xff]
  %v355 = vld [vmem:[%s324 + $0xf0] sm:$0xff]
  %v356 = vld [vmem:[%s324 + $0xf8] sm:$0xff]
  %v357 = vunpack.c.l.bf16 %v325
  %v358 = vunpack.c.h.bf16 %v325
  %v359 = vunpack.c.l.bf16 %v326
  %v360 = vunpack.c.h.bf16 %v326
  %v361 = vunpack.c.l.bf16 %v327
  %v362 = vunpack.c.h.bf16 %v327
  %v363 = vunpack.c.l.bf16 %v328
  %v364 = vunpack.c.h.bf16 %v328
  %v365 = vunpack.c.l.bf16 %v329
  %v366 = vunpack.c.h.bf16 %v329
  %v367 = vunpack.c.l.bf16 %v330
  %v368 = vunpack.c.h.bf16 %v330
  %v369 = vunpack.c.l.bf16 %v331
  %v370 = vunpack.c.h.bf16 %v331
  %v371 = vunpack.c.l.bf16 %v332
  %v372 = vunpack.c.h.bf16 %v332
  %v373 = vunpack.c.l.bf16 %v333
  %v374 = vunpack.c.h.bf16 %v333
  %v375 = vunpack.c.l.bf16 %v334
  %v376 = vunpack.c.h.bf16 %v334
  %v377 = vunpack.c.l.bf16 %v335
  %v378 = vunpack.c.h.bf16 %v335
  %v379 = vunpack.c.l.bf16 %v336
  %v380 = vunpack.c.h.bf16 %v336
  %v381 = vunpack.c.l.bf16 %v337
  %v382 = vunpack.c.h.bf16 %v337
  %v383 = vunpack.c.l.bf16 %v338
  %v384 = vunpack.c.h.bf16 %v338
  %v385 = vunpack.c.l.bf16 %v339
  %v386 = vunpack.c.h.bf16 %v339
  %v387 = vunpack.c.l.bf16 %v340
  %v388 = vunpack.c.h.bf16 %v340
  %v389 = vunpack.c.l.bf16 %v341
  %v390 = vunpack.c.h.bf16 %v341
  %v391 = vunpack.c.l.bf16 %v342
  %v392 = vunpack.c.h.bf16 %v342
  %v393 = vunpack.c.l.bf16 %v343
  %v394 = vunpack.c.h.bf16 %v343
  %v395 = vunpack.c.l.bf16 %v344
  %v396 = vunpack.c.h.bf16 %v344
  %v397 = vunpack.c.l.bf16 %v345
  %v398 = vunpack.c.h.bf16 %v345
  %v399 = vunpack.c.l.bf16 %v346
  %v400 = vunpack.c.h.bf16 %v346
  %v401 = vunpack.c.l.bf16 %v347
  %v402 = vunpack.c.h.bf16 %v347
  %v403 = vunpack.c.l.bf16 %v348
  %v404 = vunpack.c.h.bf16 %v348
  %v405 = vunpack.c.l.bf16 %v349
  %v406 = vunpack.c.h.bf16 %v349
  %v407 = vunpack.c.l.bf16 %v350
  %v408 = vunpack.c.h.bf16 %v350
  %v409 = vunpack.c.l.bf16 %v351
  %v410 = vunpack.c.h.bf16 %v351
  %v411 = vunpack.c.l.bf16 %v352
  %v412 = vunpack.c.h.bf16 %v352
  %v413 = vunpack.c.l.bf16 %v353
  %v414 = vunpack.c.h.bf16 %v353
  %v415 = vunpack.c.l.bf16 %v354
  %v416 = vunpack.c.h.bf16 %v354
  %v417 = vunpack.c.l.bf16 %v355
  %v418 = vunpack.c.h.bf16 %v355
  %v419 = vunpack.c.l.bf16 %v356
  %v420 = vunpack.c.h.bf16 %v356
  %421 = vmatprep.subr.mxu0 %v388
  %422 = vmatpush1.xpose.msra.mxu0 %v387
  %423 = vmatprep.subr.mxu0 %v386
  %424 = vmatpush1.xpose.msra.mxu0 %v385
  %425 = vmatprep.subr.mxu0 %v384
  %426 = vmatpush1.xpose.msra.mxu0 %v383
  %427 = vmatprep.subr.mxu0 %v382
  %428 = vmatpush1.xpose.msra.mxu0 %v381
  %429 = vmatprep.subr.mxu0 %v380
  %430 = vmatpush1.xpose.msra.mxu0 %v379
  %431 = vmatprep.subr.mxu0 %v378
  %432 = vmatpush1.xpose.msra.mxu0 %v377
  %433 = vmatprep.subr.mxu0 %v376
  %434 = vmatpush1.xpose.msra.mxu0 %v375
  %435 = vmatprep.subr.mxu0 %v374
  %436 = vmatpush1.xpose.msra.mxu0 %v373
  %437 = vmatprep.subr.mxu0 %v372
  %438 = vmatpush1.xpose.msra.mxu0 %v371
  %439 = vmatprep.subr.mxu0 %v370
  %440 = vmatpush1.xpose.msra.mxu0 %v369
  %441 = vmatprep.subr.mxu0 %v368
  %442 = vmatpush1.xpose.msra.mxu0 %v367
  %443 = vmatprep.subr.mxu0 %v366
  %444 = vmatpush1.xpose.msra.mxu0 %v365
  %445 = vmatprep.subr.mxu0 %v364
  %446 = vmatpush1.xpose.msra.mxu0 %v363
  %447 = vmatprep.subr.mxu0 %v362
  %448 = vmatpush1.xpose.msra.mxu0 %v361
  %449 = vmatprep.subr.mxu0 %v360
  %450 = vmatpush1.xpose.msra.mxu0 %v359
  %451 = vmatprep.subr.mxu0 %v358
  %452 = vmatpush1.xpose.msra.mxu0 %v357
  %453 = vmatprep.subr.mxu0 %v420
  %454 = vmatpush2.xpose.msra.mxu0 %v419
  %455 = vmatprep.subr.mxu0 %v418
  %456 = vmatpush2.xpose.msra.mxu0 %v417
  %457 = vmatprep.subr.mxu0 %v416
  %458 = vmatpush2.xpose.msra.mxu0 %v415
  %459 = vmatprep.subr.mxu0 %v414
  %460 = vmatpush2.xpose.msra.mxu0 %v413
  %461 = vmatprep.subr.mxu0 %v412
  %462 = vmatpush2.xpose.msra.mxu0 %v411
  %463 = vmatprep.subr.mxu0 %v410
  %464 = vmatpush2.xpose.msra.mxu0 %v409
  %465 = vmatprep.subr.mxu0 %v408
  %466 = vmatpush2.xpose.msra.mxu0 %v407
  %467 = vmatprep.subr.mxu0 %v406
  %468 = vmatpush2.xpose.msra.mxu0 %v405
  %469 = vmatprep.subr.mxu0 %v404
  %470 = vmatpush2.xpose.msra.mxu0 %v403
  %471 = vmatprep.subr.mxu0 %v402
  %472 = vmatpush2.xpose.msra.mxu0 %v401
  %473 = vmatprep.subr.mxu0 %v400
  %474 = vmatpush2.xpose.msra.mxu0 %v399
  %475 = vmatprep.subr.mxu0 %v398
  %476 = vmatpush2.xpose.msra.mxu0 %v397
  %477 = vmatprep.subr.mxu0 %v396
  %478 = vmatpush2.xpose.msra.mxu0 %v395
  %479 = vmatprep.subr.mxu0 %v394
  %480 = vmatpush2.xpose.msra.mxu0 %v393
  %481 = vmatprep.subr.mxu0 %v392
  %482 = vmatpush2.xpose.msra.mxu0 %v391
  %483 = vmatprep.subr.mxu0 %v390
  %484 = vmatpush2.xpose.msra.mxu0 %v389
  %485 = vmatprep.mubr.f32.mxu0 %v323
  %486 = vmatmul.mubr.f32.gmra.mxu0 %v322
  %v487 = vpop.f32.mrf.mxu0
  %v488 = vadd.f32 0.0, %v487
  %v489 = vpop.f32.mrf.mxu0
  %v490 = vadd.f32 0.0, %v489
  %491 = vdwg.mxu0
  %s492 = scalar_lea.vmem %s3, 1
  %v493 = vld [vmem:[%s492] ss:$8 sm:$0x3]
  %v495 = vlaneseq
  %v496 = vshrl.u32 %v495, 7
  %v497 = vsub.s32 0, %v496
  %v498 = vrot.slane %v493, %v497
  %v499 = vlaneseq
  %v500 = vshrl.u32 %v499, 7
  %v501 = vsub.s32 1, %v500
  %v502 = vrot.slane %v493, %v501
  %v505 = vmul.f32 %v488, %v498
  %v506 = vmul.f32 %v490, %v502
  %s507 = scalar_lea.vmem %s2, 3
  %v508 = vld [vmem:[%s507] ss:$8 sm:$0x3]
  %v510 = vlaneseq
  %v511 = vshrl.u32 %v510, 7
  %v512 = vsub.s32 0, %v511
  %v513 = vrot.slane %v508, %v512
  %v514 = vlaneseq
  %v515 = vshrl.u32 %v514, 7
  %v516 = vsub.s32 1, %v515
  %v517 = vrot.slane %v508, %v516
  %v520 = vadd.f32 %v505, %v513
  %v521 = vadd.f32 %v506, %v517
  %s522 = scalar_lea.vmem %s1, 512
  %v523 = vld [vmem:[%s522] sm:$0xff]
  %v524 = vld [vmem:[%s522 + $0x8] sm:$0xff]
  %v525 = vld [vmem:[%s522 + $0x10] sm:$0xff]
  %v526 = vld [vmem:[%s522 + $0x18] sm:$0xff]
  %v527 = vld [vmem:[%s522 + $0x20] sm:$0xff]
  %v528 = vld [vmem:[%s522 + $0x28] sm:$0xff]
  %v529 = vld [vmem:[%s522 + $0x30] sm:$0xff]
  %v530 = vld [vmem:[%s522 + $0x38] sm:$0xff]
  %v531 = vld [vmem:[%s522 + $0x40] sm:$0xff]
  %v532 = vld [vmem:[%s522 + $0x48] sm:$0xff]
  %v533 = vld [vmem:[%s522 + $0x50] sm:$0xff]
  %v534 = vld [vmem:[%s522 + $0x58] sm:$0xff]
  %v535 = vld [vmem:[%s522 + $0x60] sm:$0xff]
  %v536 = vld [vmem:[%s522 + $0x68] sm:$0xff]
  %v537 = vld [vmem:[%s522 + $0x70] sm:$0xff]
  %v538 = vld [vmem:[%s522 + $0x78] sm:$0xff]
  %v539 = vld [vmem:[%s522 + $0x80] sm:$0xff]
  %v540 = vld [vmem:[%s522 + $0x88] sm:$0xff]
  %v541 = vld [vmem:[%s522 + $0x90] sm:$0xff]
  %v542 = vld [vmem:[%s522 + $0x98] sm:$0xff]
  %v543 = vld [vmem:[%s522 + $0xa0] sm:$0xff]
  %v544 = vld [vmem:[%s522 + $0xa8] sm:$0xff]
  %v545 = vld [vmem:[%s522 + $0xb0] sm:$0xff]
  %v546 = vld [vmem:[%s522 + $0xb8] sm:$0xff]
  %v547 = vld [vmem:[%s522 + $0xc0] sm:$0xff]
  %v548 = vld [vmem:[%s522 + $0xc8] sm:$0xff]
  %v549 = vld [vmem:[%s522 + $0xd0] sm:$0xff]
  %v550 = vld [vmem:[%s522 + $0xd8] sm:$0xff]
  %v551 = vld [vmem:[%s522 + $0xe0] sm:$0xff]
  %v552 = vld [vmem:[%s522 + $0xe8] sm:$0xff]
  %v553 = vld [vmem:[%s522 + $0xf0] sm:$0xff]
  %v554 = vld [vmem:[%s522 + $0xf8] sm:$0xff]
  %v555 = vunpack.c.l.bf16 %v523
  %v556 = vunpack.c.h.bf16 %v523
  %v557 = vunpack.c.l.bf16 %v524
  %v558 = vunpack.c.h.bf16 %v524
  %v559 = vunpack.c.l.bf16 %v525
  %v560 = vunpack.c.h.bf16 %v525
  %v561 = vunpack.c.l.bf16 %v526
  %v562 = vunpack.c.h.bf16 %v526
  %v563 = vunpack.c.l.bf16 %v527
  %v564 = vunpack.c.h.bf16 %v527
  %v565 = vunpack.c.l.bf16 %v528
  %v566 = vunpack.c.h.bf16 %v528
  %v567 = vunpack.c.l.bf16 %v529
  %v568 = vunpack.c.h.bf16 %v529
  %v569 = vunpack.c.l.bf16 %v530
  %v570 = vunpack.c.h.bf16 %v530
  %v571 = vunpack.c.l.bf16 %v531
  %v572 = vunpack.c.h.bf16 %v531
  %v573 = vunpack.c.l.bf16 %v532
  %v574 = vunpack.c.h.bf16 %v532
  %v575 = vunpack.c.l.bf16 %v533
  %v576 = vunpack.c.h.bf16 %v533
  %v577 = vunpack.c.l.bf16 %v534
  %v578 = vunpack.c.h.bf16 %v534
  %v579 = vunpack.c.l.bf16 %v535
  %v580 = vunpack.c.h.bf16 %v535
  %v581 = vunpack.c.l.bf16 %v536
  %v582 = vunpack.c.h.bf16 %v536
  %v583 = vunpack.c.l.bf16 %v537
  %v584 = vunpack.c.h.bf16 %v537
  %v585 = vunpack.c.l.bf16 %v538
  %v586 = vunpack.c.h.bf16 %v538
  %v587 = vunpack.c.l.bf16 %v539
  %v588 = vunpack.c.h.bf16 %v539
  %v589 = vunpack.c.l.bf16 %v540
  %v590 = vunpack.c.h.bf16 %v540
  %v591 = vunpack.c.l.bf16 %v541
  %v592 = vunpack.c.h.bf16 %v541
  %v593 = vunpack.c.l.bf16 %v542
  %v594 = vunpack.c.h.bf16 %v542
  %v595 = vunpack.c.l.bf16 %v543
  %v596 = vunpack.c.h.bf16 %v543
  %v597 = vunpack.c.l.bf16 %v544
  %v598 = vunpack.c.h.bf16 %v544
  %v599 = vunpack.c.l.bf16 %v545
  %v600 = vunpack.c.h.bf16 %v545
  %v601 = vunpack.c.l.bf16 %v546
  %v602 = vunpack.c.h.bf16 %v546
  %v603 = vunpack.c.l.bf16 %v547
  %v604 = vunpack.c.h.bf16 %v547
  %v605 = vunpack.c.l.bf16 %v548
  %v606 = vunpack.c.h.bf16 %v548
  %v607 = vunpack.c.l.bf16 %v549
  %v608 = vunpack.c.h.bf16 %v549
  %v609 = vunpack.c.l.bf16 %v550
  %v610 = vunpack.c.h.bf16 %v550
  %v611 = vunpack.c.l.bf16 %v551
  %v612 = vunpack.c.h.bf16 %v551
  %v613 = vunpack.c.l.bf16 %v552
  %v614 = vunpack.c.h.bf16 %v552
  %v615 = vunpack.c.l.bf16 %v553
  %v616 = vunpack.c.h.bf16 %v553
  %v617 = vunpack.c.l.bf16 %v554
  %v618 = vunpack.c.h.bf16 %v554
  %619 = vmatprep.subr.mxu0 %v586
  %620 = vmatpush1.xpose.msra.mxu0 %v585
  %621 = vmatprep.subr.mxu0 %v584
  %622 = vmatpush1.xpose.msra.mxu0 %v583
  %623 = vmatprep.subr.mxu0 %v582
  %624 = vmatpush1.xpose.msra.mxu0 %v581
  %625 = vmatprep.subr.mxu0 %v580
  %626 = vmatpush1.xpose.msra.mxu0 %v579
  %627 = vmatprep.subr.mxu0 %v578
  %628 = vmatpush1.xpose.msra.mxu0 %v577
  %629 = vmatprep.subr.mxu0 %v576
  %630 = vmatpush1.xpose.msra.mxu0 %v575
  %631 = vmatprep.subr.mxu0 %v574
  %632 = vmatpush1.xpose.msra.mxu0 %v573
  %633 = vmatprep.subr.mxu0 %v572
  %634 = vmatpush1.xpose.msra.mxu0 %v571
  %635 = vmatprep.subr.mxu0 %v570
  %636 = vmatpush1.xpose.msra.mxu0 %v569
  %637 = vmatprep.subr.mxu0 %v568
  %638 = vmatpush1.xpose.msra.mxu0 %v567
  %639 = vmatprep.subr.mxu0 %v566
  %640 = vmatpush1.xpose.msra.mxu0 %v565
  %641 = vmatprep.subr.mxu0 %v564
  %642 = vmatpush1.xpose.msra.mxu0 %v563
  %643 = vmatprep.subr.mxu0 %v562
  %644 = vmatpush1.xpose.msra.mxu0 %v561
  %645 = vmatprep.subr.mxu0 %v560
  %646 = vmatpush1.xpose.msra.mxu0 %v559
  %647 = vmatprep.subr.mxu0 %v558
  %648 = vmatpush1.xpose.msra.mxu0 %v557
  %649 = vmatprep.subr.mxu0 %v556
  %650 = vmatpush1.xpose.msra.mxu0 %v555
  %651 = vmatprep.subr.mxu0 %v618
  %652 = vmatpush2.xpose.msra.mxu0 %v617
  %653 = vmatprep.subr.mxu0 %v616
  %654 = vmatpush2.xpose.msra.mxu0 %v615
  %655 = vmatprep.subr.mxu0 %v614
  %656 = vmatpush2.xpose.msra.mxu0 %v613
  %657 = vmatprep.subr.mxu0 %v612
  %658 = vmatpush2.xpose.msra.mxu0 %v611
  %659 = vmatprep.subr.mxu0 %v610
  %660 = vmatpush2.xpose.msra.mxu0 %v609
  %661 = vmatprep.subr.mxu0 %v608
  %662 = vmatpush2.xpose.msra.mxu0 %v607
  %663 = vmatprep.subr.mxu0 %v606
  %664 = vmatpush2.xpose.msra.mxu0 %v605
  %665 = vmatprep.subr.mxu0 %v604
  %666 = vmatpush2.xpose.msra.mxu0 %v603
  %667 = vmatprep.subr.mxu0 %v602
  %668 = vmatpush2.xpose.msra.mxu0 %v601
  %669 = vmatprep.subr.mxu0 %v600
  %670 = vmatpush2.xpose.msra.mxu0 %v599
  %671 = vmatprep.subr.mxu0 %v598
  %672 = vmatpush2.xpose.msra.mxu0 %v597
  %673 = vmatprep.subr.mxu0 %v596
  %674 = vmatpush2.xpose.msra.mxu0 %v595
  %675 = vmatprep.subr.mxu0 %v594
  %676 = vmatpush2.xpose.msra.mxu0 %v593
  %677 = vmatprep.subr.mxu0 %v592
  %678 = vmatpush2.xpose.msra.mxu0 %v591
  %679 = vmatprep.subr.mxu0 %v590
  %680 = vmatpush2.xpose.msra.mxu0 %v589
  %681 = vmatprep.subr.mxu0 %v588
  %682 = vmatpush2.xpose.msra.mxu0 %v587
  %683 = vmatprep.mubr.f32.mxu0 %v521
  %684 = vmatmul.mubr.f32.gmra.mxu0 %v520
  %v685 = vpop.f32.mrf.mxu0
  %v686 = vadd.f32 0.0, %v685
  %v687 = vpop.f32.mrf.mxu0
  %v688 = vadd.f32 0.0, %v687
  %689 = vdwg.mxu0
  %s690 = scalar_lea.vmem %s3, 2
  %v691 = vld [vmem:[%s690] ss:$8 sm:$0x3]
  %v693 = vlaneseq
  %v694 = vshrl.u32 %v693, 7
  %v695 = vsub.s32 0, %v694
  %v696 = vrot.slane %v691, %v695
  %v697 = vlaneseq
  %v698 = vshrl.u32 %v697, 7
  %v699 = vsub.s32 1, %v698
  %v700 = vrot.slane %v691, %v699
  %v703 = vmul.f32 %v686, %v696
  %v704 = vmul.f32 %v688, %v700
  %s705 = scalar_lea.vmem %s2, 4
  %v706 = vld [vmem:[%s705] ss:$8 sm:$0x3]
  %v708 = vlaneseq
  %v709 = vshrl.u32 %v708, 7
  %v710 = vsub.s32 0, %v709
  %v711 = vrot.slane %v706, %v710
  %v712 = vlaneseq
  %v713 = vshrl.u32 %v712, 7
  %v714 = vsub.s32 1, %v713
  %v715 = vrot.slane %v706, %v714
  %v718 = vadd.f32 %v703, %v711
  %v719 = vadd.f32 %v704, %v715
  %v720 = vrot.slane %v718, 4
  %v721 = vadd.f32 %v718, %v720
  %v722 = vrot.slane %v721, 2
  %v723 = vadd.f32 %v721, %v722
  %v724 = vrot.slane %v723, 1
  %v725 = vadd.f32 %v723, %v724
  %v726 = vrot.slane %v719, 4
  %v727 = vadd.f32 %v719, %v726
  %v728 = vrot.slane %v727, 2
  %v729 = vadd.f32 %v727, %v728
  %v730 = vrot.slane %v729, 1
  %v731 = vadd.f32 %v729, %v730
  %v732 = vmul.f32 %v725, 0.125
  %v733 = vmul.f32 %v731, 0.125
  %v734 = vmul.f32 %v718, %v718
  %v735 = vmul.f32 %v719, %v719
  %v736 = vrot.slane %v734, 4
  %v737 = vadd.f32 %v734, %v736
  %v738 = vrot.slane %v737, 2
  %v739 = vadd.f32 %v737, %v738
  %v740 = vrot.slane %v739, 1
  %v741 = vadd.f32 %v739, %v740
  %v742 = vrot.slane %v735, 4
  %v743 = vadd.f32 %v735, %v742
  %v744 = vrot.slane %v743, 2
  %v745 = vadd.f32 %v743, %v744
  %v746 = vrot.slane %v745, 1
  %v747 = vadd.f32 %v745, %v746
  %v748 = vmul.f32 %v741, 0.125
  %v749 = vmul.f32 %v747, 0.125
  %v750 = vmul.f32 %v732, %v732
  %v751 = vmul.f32 %v733, %v733
  %v752 = vsub.f32 %v748, %v750
  %v753 = vsub.f32 %v749, %v751
  %s754 = scalar_lea.vmem %s2, 5
  %v755 = vld [vmem:[%s754] ss:$8 sm:$0x3]
  %v756 = vadd.f32 %v752, 1e-05
  %v757 = vadd.f32 %v753, 1e-05
  %v758 = vrsqrt.pop %v756
  %v759 = vrsqrt.pop %v757
  %v762 = vcombine.low %v758, %v759
  %v764 = vunpack.c.l.s4 1966171168
  %v765 = vunpack.c.0.s8 %v764
  %v766 = vlaneseq
  %v767 = vshrl.u32 %v766, 7
  %v768 = vsub.s32 %v765, %v767
  %v769 = vrot.slane %v762, %v768
  %v771 = vunpack.c.l.s4 1966171168
  %v772 = vunpack.c.0.s8 %v771
  %v773 = vlaneseq
  %v774 = vshrl.u32 %v773, 7
  %v775 = vsub.s32 %v772, %v774
  %v776 = vrot.slane %v769, %v775
  %v778 = vmul.f32 %v755, %v776
  %s779 = scalar_lea.vmem %s2, 6
  %v780 = vld [vmem:[%s779] ss:$8 sm:$0x3]
  %v782 = vlaneseq
  %v783 = vshrl.u32 %v782, 7
  %v784 = vsub.s32 0, %v783
  %v785 = vrot.slane %v778, %v784
  %v786 = vlaneseq
  %v787 = vshrl.u32 %v786, 7
  %v788 = vsub.s32 1, %v787
  %v789 = vrot.slane %v778, %v788
  %v792 = vmul.f32 %v732, %v785
  %v793 = vmul.f32 %v733, %v789
  %v796 = vcombine.low %v792, %v793
  %v798 = vunpack.c.l.s4 1966171168
  %v799 = vunpack.c.0.s8 %v798
  %v800 = vlaneseq
  %v801 = vshrl.u32 %v800, 7
  %v802 = vsub.s32 %v799, %v801
  %v803 = vrot.slane %v796, %v802
  %v805 = vunpack.c.l.s4 1966171168
  %v806 = vunpack.c.0.s8 %v805
  %v807 = vlaneseq
  %v808 = vshrl.u32 %v807, 7
  %v809 = vsub.s32 %v806, %v808
  %v810 = vrot.slane %v803, %v809
  %v812 = vsub.f32 %v780, %v810
  %v813 = vmul.f32 %v718, %v785
  %v814 = vmul.f32 %v719, %v789
  %v816 = vlaneseq
  %v817 = vshrl.u32 %v816, 7
  %v818 = vsub.s32 0, %v817
  %v819 = vrot.slane %v812, %v818
  %v820 = vlaneseq
  %v821 = vshrl.u32 %v820, 7
  %v822 = vsub.s32 1, %v821
  %v823 = vrot.slane %v812, %v822
  %v826 = vadd.f32 %v813, %v819
  %v827 = vadd.f32 %v814, %v823
  %v828 = vmax.f32 %v826, 0.0
  %v829 = vmax.f32 %v827, 0.0
  %s830 = scalar_lea.vmem %s1, 768
  %v831 = vld [vmem:[%s830] sm:$0xff]
  %v832 = vld [vmem:[%s830 + $0x8] sm:$0xff]
  %v833 = vld [vmem:[%s830 + $0x10] sm:$0xff]
  %v834 = vld [vmem:[%s830 + $0x18] sm:$0xff]
  %v835 = vld [vmem:[%s830 + $0x20] sm:$0xff]
  %v836 = vld [vmem:[%s830 + $0x28] sm:$0xff]
  %v837 = vld [vmem:[%s830 + $0x30] sm:$0xff]
  %v838 = vld [vmem:[%s830 + $0x38] sm:$0xff]
  %v839 = vld [vmem:[%s830 + $0x40] sm:$0xff]
  %v840 = vld [vmem:[%s830 + $0x48] sm:$0xff]
  %v841 = vld [vmem:[%s830 + $0x50] sm:$0xff]
  %v842 = vld [vmem:[%s830 + $0x58] sm:$0xff]
  %v843 = vld [vmem:[%s830 + $0x60] sm:$0xff]
  %v844 = vld [vmem:[%s830 + $0x68] sm:$0xff]
  %v845 = vld [vmem:[%s830 + $0x70] sm:$0xff]
  %v846 = vld [vmem:[%s830 + $0x78] sm:$0xff]
  %v847 = vld [vmem:[%s830 + $0x80] sm:$0xff]
  %v848 = vld [vmem:[%s830 + $0x88] sm:$0xff]
  %v849 = vld [vmem:[%s830 + $0x90] sm:$0xff]
  %v850 = vld [vmem:[%s830 + $0x98] sm:$0xff]
  %v851 = vld [vmem:[%s830 + $0xa0] sm:$0xff]
  %v852 = vld [vmem:[%s830 + $0xa8] sm:$0xff]
  %v853 = vld [vmem:[%s830 + $0xb0] sm:$0xff]
  %v854 = vld [vmem:[%s830 + $0xb8] sm:$0xff]
  %v855 = vld [vmem:[%s830 + $0xc0] sm:$0xff]
  %v856 = vld [vmem:[%s830 + $0xc8] sm:$0xff]
  %v857 = vld [vmem:[%s830 + $0xd0] sm:$0xff]
  %v858 = vld [vmem:[%s830 + $0xd8] sm:$0xff]
  %v859 = vld [vmem:[%s830 + $0xe0] sm:$0xff]
  %v860 = vld [vmem:[%s830 + $0xe8] sm:$0xff]
  %v861 = vld [vmem:[%s830 + $0xf0] sm:$0xff]
  %v862 = vld [vmem:[%s830 + $0xf8] sm:$0xff]
  %v863 = vunpack.c.l.bf16 %v831
  %v864 = vunpack.c.h.bf16 %v831
  %v865 = vunpack.c.l.bf16 %v832
  %v866 = vunpack.c.h.bf16 %v832
  %v867 = vunpack.c.l.bf16 %v833
  %v868 = vunpack.c.h.bf16 %v833
  %v869 = vunpack.c.l.bf16 %v834
  %v870 = vunpack.c.h.bf16 %v834
  %v871 = vunpack.c.l.bf16 %v835
  %v872 = vunpack.c.h.bf16 %v835
  %v873 = vunpack.c.l.bf16 %v836
  %v874 = vunpack.c.h.bf16 %v836
  %v875 = vunpack.c.l.bf16 %v837
  %v876 = vunpack.c.h.bf16 %v837
  %v877 = vunpack.c.l.bf16 %v838
  %v878 = vunpack.c.h.bf16 %v838
  %v879 = vunpack.c.l.bf16 %v839
  %v880 = vunpack.c.h.bf16 %v839
  %v881 = vunpack.c.l.bf16 %v840
  %v882 = vunpack.c.h.bf16 %v840
  %v883 = vunpack.c.l.bf16 %v841
  %v884 = vunpack.c.h.bf16 %v841
  %v885 = vunpack.c.l.bf16 %v842
  %v886 = vunpack.c.h.bf16 %v842
  %v887 = vunpack.c.l.bf16 %v843
  %v888 = vunpack.c.h.bf16 %v843
  %v889 = vunpack.c.l.bf16 %v844
  %v890 = vunpack.c.h.bf16 %v844
  %v891 = vunpack.c.l.bf16 %v845
  %v892 = vunpack.c.h.bf16 %v845
  %v893 = vunpack.c.l.bf16 %v846
  %v894 = vunpack.c.h.bf16 %v846
  %v895 = vunpack.c.l.bf16 %v847
  %v896 = vunpack.c.h.bf16 %v847
  %v897 = vunpack.c.l.bf16 %v848
  %v898 = vunpack.c.h.bf16 %v848
  %v899 = vunpack.c.l.bf16 %v849
  %v900 = vunpack.c.h.bf16 %v849
  %v901 = vunpack.c.l.bf16 %v850
  %v902 = vunpack.c.h.bf16 %v850
  %v903 = vunpack.c.l.bf16 %v851
  %v904 = vunpack.c.h.bf16 %v851
  %v905 = vunpack.c.l.bf16 %v852
  %v906 = vunpack.c.h.bf16 %v852
  %v907 = vunpack.c.l.bf16 %v853
  %v908 = vunpack.c.h.bf16 %v853
  %v909 = vunpack.c.l.bf16 %v854
  %v910 = vunpack.c.h.bf16 %v854
  %v911 = vunpack.c.l.bf16 %v855
  %v912 = vunpack.c.h.bf16 %v855
  %v913 = vunpack.c.l.bf16 %v856
  %v914 = vunpack.c.h.bf16 %v856
  %v915 = vunpack.c.l.bf16 %v857
  %v916 = vunpack.c.h.bf16 %v857
  %v917 = vunpack.c.l.bf16 %v858
  %v918 = vunpack.c.h.bf16 %v858
  %v919 = vunpack.c.l.bf16 %v859
  %v920 = vunpack.c.h.bf16 %v859
  %v921 = vunpack.c.l.bf16 %v860
  %v922 = vunpack.c.h.bf16 %v860
  %v923 = vunpack.c.l.bf16 %v861
  %v924 = vunpack.c.h.bf16 %v861
  %v925 = vunpack.c.l.bf16 %v862
  %v926 = vunpack.c.h.bf16 %v862
  %927 = vmatprep.subr.mxu0 %v894
  %928 = vmatpush1.xpose.msra.mxu0 %v893
  %929 = vmatprep.subr.mxu0 %v892
  %930 = vmatpush1.xpose.msra.mxu0 %v891
  %931 = vmatprep.subr.mxu0 %v890
  %932 = vmatpush1.xpose.msra.mxu0 %v889
  %933 = vmatprep.subr.mxu0 %v888
  %934 = vmatpush1.xpose.msra.mxu0 %v887
  %935 = vmatprep.subr.mxu0 %v886
  %936 = vmatpush1.xpose.msra.mxu0 %v885
  %937 = vmatprep.subr.mxu0 %v884
  %938 = vmatpush1.xpose.msra.mxu0 %v883
  %939 = vmatprep.subr.mxu0 %v882
  %940 = vmatpush1.xpose.msra.mxu0 %v881
  %941 = vmatprep.subr.mxu0 %v880
  %942 = vmatpush1.xpose.msra.mxu0 %v879
  %943 = vmatprep.subr.mxu0 %v878
  %944 = vmatpush1.xpose.msra.mxu0 %v877
  %945 = vmatprep.subr.mxu0 %v876
  %946 = vmatpush1.xpose.msra.mxu0 %v875
  %947 = vmatprep.subr.mxu0 %v874
  %948 = vmatpush1.xpose.msra.mxu0 %v873
  %949 = vmatprep.subr.mxu0 %v872
  %950 = vmatpush1.xpose.msra.mxu0 %v871
  %951 = vmatprep.subr.mxu0 %v870
  %952 = vmatpush1.xpose.msra.mxu0 %v869
  %953 = vmatprep.subr.mxu0 %v868
  %954 = vmatpush1.xpose.msra.mxu0 %v867
  %955 = vmatprep.subr.mxu0 %v866
  %956 = vmatpush1.xpose.msra.mxu0 %v865
  %957 = vmatprep.subr.mxu0 %v864
  %958 = vmatpush1.xpose.msra.mxu0 %v863
  %959 = vmatprep.subr.mxu0 %v926
  %960 = vmatpush2.xpose.msra.mxu0 %v925
  %961 = vmatprep.subr.mxu0 %v924
  %962 = vmatpush2.xpose.msra.mxu0 %v923
  %963 = vmatprep.subr.mxu0 %v922
  %964 = vmatpush2.xpose.msra.mxu0 %v921
  %965 = vmatprep.subr.mxu0 %v920
  %966 = vmatpush2.xpose.msra.mxu0 %v919
  %967 = vmatprep.subr.mxu0 %v918
  %968 = vmatpush2.xpose.msra.mxu0 %v917
  %969 = vmatprep.subr.mxu0 %v916
  %970 = vmatpush2.xpose.msra.mxu0 %v915
  %971 = vmatprep.subr.mxu0 %v914
  %972 = vmatpush2.xpose.msra.mxu0 %v913
  %973 = vmatprep.subr.mxu0 %v912
  %974 = vmatpush2.xpose.msra.mxu0 %v911
  %975 = vmatprep.subr.mxu0 %v910
  %976 = vmatpush2.xpose.msra.mxu0 %v909
  %977 = vmatprep.subr.mxu0 %v908
  %978 = vmatpush2.xpose.msra.mxu0 %v907
  %979 = vmatprep.subr.mxu0 %v906
  %980 = vmatpush2.xpose.msra.mxu0 %v905
  %981 = vmatprep.subr.mxu0 %v904
  %982 = vmatpush2.xpose.msra.mxu0 %v903
  %983 = vmatprep.subr.mxu0 %v902
  %984 = vmatpush2.xpose.msra.mxu0 %v901
  %985 = vmatprep.subr.mxu0 %v900
  %986 = vmatpush2.xpose.msra.mxu0 %v899
  %987 = vmatprep.subr.mxu0 %v898
  %988 = vmatpush2.xpose.msra.mxu0 %v897
  %989 = vmatprep.subr.mxu0 %v896
  %990 = vmatpush2.xpose.msra.mxu0 %v895
  %991 = vmatprep.mubr.f32.mxu0 %v829
  %992 = vmatmul.mubr.f32.gmra.mxu0 %v828
  %v993 = vpop.f32.mrf.mxu0
  %v994 = vadd.f32 0.0, %v993
  %v995 = vpop.f32.mrf.mxu0
  %v996 = vadd.f32 0.0, %v995
  %997 = vdwg.mxu0
  %s998 = scalar_lea.vmem %s3, 3
  %v999 = vld [vmem:[%s998] ss:$8 sm:$0x3]
  %v1001 = vlaneseq
  %v1002 = vshrl.u32 %v1001, 7
  %v1003 = vsub.s32 0, %v1002
  %v1004 = vrot.slane %v999, %v1003
  %v1005 = vlaneseq
  %v1006 = vshrl.u32 %v1005, 7
  %v1007 = vsub.s32 1, %v1006
  %v1008 = vrot.slane %v999, %v1007
  %v1011 = vmul.f32 %v994, %v1004
  %v1012 = vmul.f32 %v996, %v1008
  %s1013 = scalar_lea.vmem %s2, 7
  %v1014 = vld [vmem:[%s1013] ss:$8 sm:$0x3]
  %v1016 = vlaneseq
  %v1017 = vshrl.u32 %v1016, 7
  %v1018 = vsub.s32 0, %v1017
  %v1019 = vrot.slane %v1014, %v1018
  %v1020 = vlaneseq
  %v1021 = vshrl.u32 %v1020, 7
  %v1022 = vsub.s32 1, %v1021
  %v1023 = vrot.slane %v1014, %v1022
  %v1026 = vadd.f32 %v1011, %v1019
  %v1027 = vadd.f32 %v1012, %v1023
  %1028 = vmatprep.subr.mxu0 %v82
  %1029 = vmatpush1.xpose.msra.mxu0 %v81
  %1030 = vmatprep.subr.mxu0 %v80
  %1031 = vmatpush1.xpose.msra.mxu0 %v79
  %1032 = vmatprep.subr.mxu0 %v78
  %1033 = vmatpush1.xpose.msra.mxu0 %v77
  %1034 = vmatprep.subr.mxu0 %v76
  %1035 = vmatpush1.xpose.msra.mxu0 %v75
  %1036 = vmatprep.subr.mxu0 %v74
  %1037 = vmatpush1.xpose.msra.mxu0 %v73
  %1038 = vmatprep.subr.mxu0 %v72
  %1039 = vmatpush1.xpose.msra.mxu0 %v71
  %1040 = vmatprep.subr.mxu0 %v70
  %1041 = vmatpush1.xpose.msra.mxu0 %v69
  %1042 = vmatprep.subr.mxu0 %v68
  %1043 = vmatpush1.xpose.msra.mxu0 %v67
  %1044 = vmatprep.subr.mxu0 %v66
  %1045 = vmatpush1.xpose.msra.mxu0 %v65
  %1046 = vmatprep.subr.mxu0 %v64
  %1047 = vmatpush1.xpose.msra.mxu0 %v63
  %1048 = vmatprep.subr.mxu0 %v62
  %1049 = vmatpush1.xpose.msra.mxu0 %v61
  %1050 = vmatprep.subr.mxu0 %v60
  %1051 = vmatpush1.xpose.msra.mxu0 %v59
  %1052 = vmatprep.subr.mxu0 %v58
  %1053 = vmatpush1.xpose.msra.mxu0 %v57
  %1054 = vmatprep.subr.mxu0 %v56
  %1055 = vmatpush1.xpose.msra.mxu0 %v55
  %1056 = vmatprep.subr.mxu0 %v54
  %1057 = vmatpush1.xpose.msra.mxu0 %v53
  %1058 = vmatprep.subr.mxu0 %v52
  %1059 = vmatpush1.xpose.msra.mxu0 %v51
  %1060 = vmatprep.subr.mxu0 %v114
  %1061 = vmatpush2.xpose.msra.mxu0 %v113
  %1062 = vmatprep.subr.mxu0 %v112
  %1063 = vmatpush2.xpose.msra.mxu0 %v111
  %1064 = vmatprep.subr.mxu0 %v110
  %1065 = vmatpush2.xpose.msra.mxu0 %v109
  %1066 = vmatprep.subr.mxu0 %v108
  %1067 = vmatpush2.xpose.msra.mxu0 %v107
  %1068 = vmatprep.subr.mxu0 %v106
  %1069 = vmatpush2.xpose.msra.mxu0 %v105
  %1070 = vmatprep.subr.mxu0 %v104
  %1071 = vmatpush2.xpose.msra.mxu0 %v103
  %1072 = vmatprep.subr.mxu0 %v102
  %1073 = vmatpush2.xpose.msra.mxu0 %v101
  %1074 = vmatprep.subr.mxu0 %v100
  %1075 = vmatpush2.xpose.msra.mxu0 %v99
  %1076 = vmatprep.subr.mxu0 %v98
  %1077 = vmatpush2.xpose.msra.mxu0 %v97
  %1078 = vmatprep.subr.mxu0 %v96
  %1079 = vmatpush2.xpose.msra.mxu0 %v95
  %1080 = vmatprep.subr.mxu0 %v94
  %1081 = vmatpush2.xpose.msra.mxu0 %v93
  %1082 = vmatprep.subr.mxu0 %v92
  %1083 = vmatpush2.xpose.msra.mxu0 %v91
  %1084 = vmatprep.subr.mxu0 %v90
  %1085 = vmatpush2.xpose.msra.mxu0 %v89
  %1086 = vmatprep.subr.mxu0 %v88
  %1087 = vmatpush2.xpose.msra.mxu0 %v87
  %1088 = vmatprep.subr.mxu0 %v86
  %1089 = vmatpush2.xpose.msra.mxu0 %v85
  %1090 = vmatprep.subr.mxu0 %v84
  %1091 = vmatpush2.xpose.msra.mxu0 %v83
  %1092 = vmatprep.mubr.f32.mxu0 %v1026
  %1093 = vmatmul.mubr.f32.gmra.mxu0 %v1027
  %v1094 = vpop.f32.mrf.mxu0
  %v1095 = vadd.f32 0.0, %v1094
  %v1096 = vpop.f32.mrf.mxu0
  %v1097 = vadd.f32 0.0, %v1096
  %1098 = vdwg.mxu0
  %v1099 = vmul.f32 %v1095, %v191
  %v1100 = vmul.f32 %v1097, %v195
  %v1101 = vadd.f32 %v1099, %v205
  %v1102 = vadd.f32 %v1100, %v209
  %v1103 = vrot.slane %v1101, 4
  %v1104 = vadd.f32 %v1101, %v1103
  %v1105 = vrot.slane %v1104, 2
  %v1106 = vadd.f32 %v1104, %v1105
  %v1107 = vrot.slane %v1106, 1
  %v1108 = vadd.f32 %v1106, %v1107
  %v1109 = vrot.slane %v1102, 4
  %v1110 = vadd.f32 %v1102, %v1109
  %v1111 = vrot.slane %v1110, 2
  %v1112 = vadd.f32 %v1110, %v1111
  %v1113 = vrot.slane %v1112, 1
  %v1114 = vadd.f32 %v1112, %v1113
  %v1115 = vmul.f32 %v1108, 0.125
  %v1116 = vmul.f32 %v1114, 0.125
  %v1117 = vmul.f32 %v1101, %v1101
  %v1118 = vmul.f32 %v1102, %v1102
  %v1119 = vrot.slane %v1117, 4
  %v1120 = vadd.f32 %v1117, %v1119
  %v1121 = vrot.slane %v1120, 2
  %v1122 = vadd.f32 %v1120, %v1121
  %v1123 = vrot.slane %v1122, 1
  %v1124 = vadd.f32 %v1122, %v1123
  %v1125 = vrot.slane %v1118, 4
  %v1126 = vadd.f32 %v1118, %v1125
  %v1127 = vrot.slane %v1126, 2
  %v1128 = vadd.f32 %v1126, %v1127
  %v1129 = vrot.slane %v1128, 1
  %v1130 = vadd.f32 %v1128, %v1129
  %v1131 = vmul.f32 %v1124, 0.125
  %v1132 = vmul.f32 %v1130, 0.125
  %v1133 = vmul.f32 %v1115, %v1115
  %v1134 = vmul.f32 %v1116, %v1116
  %v1135 = vsub.f32 %v1131, %v1133
  %v1136 = vsub.f32 %v1132, %v1134
  %v1137 = vadd.f32 %v1135, 1e-05
  %v1138 = vadd.f32 %v1136, 1e-05
  %v1139 = vrsqrt.pop %v1137
  %v1140 = vrsqrt.pop %v1138
  %v1143 = vcombine.low %v1139, %v1140
  %v1145 = vunpack.c.l.s4 1966171168
  %v1146 = vunpack.c.0.s8 %v1145
  %v1147 = vlaneseq
  %v1148 = vshrl.u32 %v1147, 7
  %v1149 = vsub.s32 %v1146, %v1148
  %v1150 = vrot.slane %v1143, %v1149
  %v1152 = vunpack.c.l.s4 1966171168
  %v1153 = vunpack.c.0.s8 %v1152
  %v1154 = vlaneseq
  %v1155 = vshrl.u32 %v1154, 7
  %v1156 = vsub.s32 %v1153, %v1155
  %v1157 = vrot.slane %v1150, %v1156
  %v1159 = vmul.f32 %v249, %v1157
  %v1161 = vlaneseq
  %v1162 = vshrl.u32 %v1161, 7
  %v1163 = vsub.s32 0, %v1162
  %v1164 = vrot.slane %v1159, %v1163
  %v1165 = vlaneseq
  %v1166 = vshrl.u32 %v1165, 7
  %v1167 = vsub.s32 1, %v1166
  %v1168 = vrot.slane %v1159, %v1167
  %v1171 = vmul.f32 %v1115, %v1164
  %v1172 = vmul.f32 %v1116, %v1168
  %v1175 = vcombine.low %v1171, %v1172
  %v1177 = vunpack.c.l.s4 1966171168
  %v1178 = vunpack.c.0.s8 %v1177
  %v1179 = vlaneseq
  %v1180 = vshrl.u32 %v1179, 7
  %v1181 = vsub.s32 %v1178, %v1180
  %v1182 = vrot.slane %v1175, %v1181
  %v1184 = vunpack.c.l.s4 1966171168
  %v1185 = vunpack.c.0.s8 %v1184
  %v1186 = vlaneseq
  %v1187 = vshrl.u32 %v1186, 7
  %v1188 = vsub.s32 %v1185, %v1187
  %v1189 = vrot.slane %v1182, %v1188
  %v1191 = vsub.f32 %v274, %v1189
  %v1192 = vmul.f32 %v1101, %v1164
  %v1193 = vmul.f32 %v1102, %v1168
  %v1195 = vlaneseq
  %v1196 = vshrl.u32 %v1195, 7
  %v1197 = vsub.s32 0, %v1196
  %v1198 = vrot.slane %v1191, %v1197
  %v1199 = vlaneseq
  %v1200 = vshrl.u32 %v1199, 7
  %v1201 = vsub.s32 1, %v1200
  %v1202 = vrot.slane %v1191, %v1201
  %v1205 = vadd.f32 %v1192, %v1198
  %v1206 = vadd.f32 %v1193, %v1202
  %v1207 = vmax.f32 %v1205, 0.0
  %v1208 = vmax.f32 %v1206, 0.0
  %1209 = vmatprep.subr.mxu0 %v388
  %1210 = vmatpush1.xpose.msra.mxu0 %v387
  %1211 = vmatprep.subr.mxu0 %v386
  %1212 = vmatpush1.xpose.msra.mxu0 %v385
  %1213 = vmatprep.subr.mxu0 %v384
  %1214 = vmatpush1.xpose.msra.mxu0 %v383
  %1215 = vmatprep.subr.mxu0 %v382
  %1216 = vmatpush1.xpose.msra.mxu0 %v381
  %1217 = vmatprep.subr.mxu0 %v380
  %1218 = vmatpush1.xpose.msra.mxu0 %v379
  %1219 = vmatprep.subr.mxu0 %v378
  %1220 = vmatpush1.xpose.msra.mxu0 %v377
  %1221 = vmatprep.subr.mxu0 %v376
  %1222 = vmatpush1.xpose.msra.mxu0 %v375
  %1223 = vmatprep.subr.mxu0 %v374
  %1224 = vmatpush1.xpose.msra.mxu0 %v373
  %1225 = vmatprep.subr.mxu0 %v372
  %1226 = vmatpush1.xpose.msra.mxu0 %v371
  %1227 = vmatprep.subr.mxu0 %v370
  %1228 = vmatpush1.xpose.msra.mxu0 %v369
  %1229 = vmatprep.subr.mxu0 %v368
  %1230 = vmatpush1.xpose.msra.mxu0 %v367
  %1231 = vmatprep.subr.mxu0 %v366
  %1232 = vmatpush1.xpose.msra.mxu0 %v365
  %1233 = vmatprep.subr.mxu0 %v364
  %1234 = vmatpush1.xpose.msra.mxu0 %v363
  %1235 = vmatprep.subr.mxu0 %v362
  %1236 = vmatpush1.xpose.msra.mxu0 %v361
  %1237 = vmatprep.subr.mxu0 %v360
  %1238 = vmatpush1.xpose.msra.mxu0 %v359
  %1239 = vmatprep.subr.mxu0 %v358
  %1240 = vmatpush1.xpose.msra.mxu0 %v357
  %1241 = vmatprep.subr.mxu0 %v420
  %1242 = vmatpush2.xpose.msra.mxu0 %v419
  %1243 = vmatprep.subr.mxu0 %v418
  %1244 = vmatpush2.xpose.msra.mxu0 %v417
  %1245 = vmatprep.subr.mxu0 %v416
  %1246 = vmatpush2.xpose.msra.mxu0 %v415
  %1247 = vmatprep.subr.mxu0 %v414
  %1248 = vmatpush2.xpose.msra.mxu0 %v413
  %1249 = vmatprep.subr.mxu0 %v412
  %1250 = vmatpush2.xpose.msra.mxu0 %v411
  %1251 = vmatprep.subr.mxu0 %v410
  %1252 = vmatpush2.xpose.msra.mxu0 %v409
  %1253 = vmatprep.subr.mxu0 %v408
  %1254 = vmatpush2.xpose.msra.mxu0 %v407
  %1255 = vmatprep.subr.mxu0 %v406
  %1256 = vmatpush2.xpose.msra.mxu0 %v405
  %1257 = vmatprep.subr.mxu0 %v404
  %1258 = vmatpush2.xpose.msra.mxu0 %v403
  %1259 = vmatprep.subr.mxu0 %v402
  %1260 = vmatpush2.xpose.msra.mxu0 %v401
  %1261 = vmatprep.subr.mxu0 %v400
  %1262 = vmatpush2.xpose.msra.mxu0 %v399
  %1263 = vmatprep.subr.mxu0 %v398
  %1264 = vmatpush2.xpose.msra.mxu0 %v397
  %1265 = vmatprep.subr.mxu0 %v396
  %1266 = vmatpush2.xpose.msra.mxu0 %v395
  %1267 = vmatprep.subr.mxu0 %v394
  %1268 = vmatpush2.xpose.msra.mxu0 %v393
  %1269 = vmatprep.subr.mxu0 %v392
  %1270 = vmatpush2.xpose.msra.mxu0 %v391
  %1271 = vmatprep.subr.mxu0 %v390
  %1272 = vmatpush2.xpose.msra.mxu0 %v389
  %1273 = vmatprep.mubr.f32.mxu0 %v1208
  %1274 = vmatmul.mubr.f32.gmra.mxu0 %v1207
  %v1275 = vpop.f32.mrf.mxu0
  %v1276 = vadd.f32 0.0, %v1275
  %v1277 = vpop.f32.mrf.mxu0
  %v1278 = vadd.f32 0.0, %v1277
  %1279 = vdwg.mxu0
  %v1280 = vmul.f32 %v1276, %v498
  %v1281 = vmul.f32 %v1278, %v502
  %v1282 = vadd.f32 %v1280, %v513
  %v1283 = vadd.f32 %v1281, %v517
  %1284 = vmatprep.subr.mxu0 %v586
  %1285 = vmatpush1.xpose.msra.mxu0 %v585
  %1286 = vmatprep.subr.mxu0 %v584
  %1287 = vmatpush1.xpose.msra.mxu0 %v583
  %1288 = vmatprep.subr.mxu0 %v582
  %1289 = vmatpush1.xpose.msra.mxu0 %v581
  %1290 = vmatprep.subr.mxu0 %v580
  %1291 = vmatpush1.xpose.msra.mxu0 %v579
  %1292 = vmatprep.subr.mxu0 %v578
  %1293 = vmatpush1.xpose.msra.mxu0 %v577
  %1294 = vmatprep.subr.mxu0 %v576
  %1295 = vmatpush1.xpose.msra.mxu0 %v575
  %1296 = vmatprep.subr.mxu0 %v574
  %1297 = vmatpush1.xpose.msra.mxu0 %v573
  %1298 = vmatprep.subr.mxu0 %v572
  %1299 = vmatpush1.xpose.msra.mxu0 %v571
  %1300 = vmatprep.subr.mxu0 %v570
  %1301 = vmatpush1.xpose.msra.mxu0 %v569
  %1302 = vmatprep.subr.mxu0 %v568
  %1303 = vmatpush1.xpose.msra.mxu0 %v567
  %1304 = vmatprep.subr.mxu0 %v566
  %1305 = vmatpush1.xpose.msra.mxu0 %v565
  %1306 = vmatprep.subr.mxu0 %v564
  %1307 = vmatpush1.xpose.msra.mxu0 %v563
  %1308 = vmatprep.subr.mxu0 %v562
  %1309 = vmatpush1.xpose.msra.mxu0 %v561
  %1310 = vmatprep.subr.mxu0 %v560
  %1311 = vmatpush1.xpose.msra.mxu0 %v559
  %1312 = vmatprep.subr.mxu0 %v558
  %1313 = vmatpush1.xpose.msra.mxu0 %v557
  %1314 = vmatprep.subr.mxu0 %v556
  %1315 = vmatpush1.xpose.msra.mxu0 %v555
  %1316 = vmatprep.subr.mxu0 %v618
  %1317 = vmatpush2.xpose.msra.mxu0 %v617
  %1318 = vmatprep.subr.mxu0 %v616
  %1319 = vmatpush2.xpose.msra.mxu0 %v615
  %1320 = vmatprep.subr.mxu0 %v614
  %1321 = vmatpush2.xpose.msra.mxu0 %v613
  %1322 = vmatprep.subr.mxu0 %v612
  %1323 = vmatpush2.xpose.msra.mxu0 %v611
  %1324 = vmatprep.subr.mxu0 %v610
  %1325 = vmatpush2.xpose.msra.mxu0 %v609
  %1326 = vmatprep.subr.mxu0 %v608
  %1327 = vmatpush2.xpose.msra.mxu0 %v607
  %1328 = vmatprep.subr.mxu0 %v606
  %1329 = vmatpush2.xpose.msra.mxu0 %v605
  %1330 = vmatprep.subr.mxu0 %v604
  %1331 = vmatpush2.xpose.msra.mxu0 %v603
  %1332 = vmatprep.subr.mxu0 %v602
  %1333 = vmatpush2.xpose.msra.mxu0 %v601
  %1334 = vmatprep.subr.mxu0 %v600
  %1335 = vmatpush2.xpose.msra.mxu0 %v599
  %1336 = vmatprep.subr.mxu0 %v598
  %1337 = vmatpush2.xpose.msra.mxu0 %v597
  %1338 = vmatprep.subr.mxu0 %v596
  %1339 = vmatpush2.xpose.msra.mxu0 %v595
  %1340 = vmatprep.subr.mxu0 %v594
  %1341 = vmatpush2.xpose.msra.mxu0 %v593
  %1342 = vmatprep.subr.mxu0 %v592
  %1343 = vmatpush2.xpose.msra.mxu0 %v591
  %1344 = vmatprep.subr.mxu0 %v590
  %1345 = vmatpush2.xpose.msra.mxu0 %v589
  %1346 = vmatprep.subr.mxu0 %v588
  %1347 = vmatpush2.xpose.msra.mxu0 %v587
  %1348 = vmatprep.mubr.f32.mxu0 %v1283
  %1349 = vmatmul.mubr.f32.gmra.mxu0 %v1282
  %v1350 = vpop.f32.mrf.mxu0
  %v1351 = vadd.f32 0.0, %v1350
  %v1352 = vpop.f32.mrf.mxu0
  %v1353 = vadd.f32 0.0, %v1352
  %1354 = vdwg.mxu0
  %v1355 = vmul.f32 %v1351, %v696
  %v1356 = vmul.f32 %v1353, %v700
  %v1357 = vadd.f32 %v1355, %v711
  %v1358 = vadd.f32 %v1356, %v715
  %v1359 = vrot.slane %v1357, 4
  %v1360 = vadd.f32 %v1357, %v1359
  %v1361 = vrot.slane %v1360, 2
  %v1362 = vadd.f32 %v1360, %v1361
  %v1363 = vrot.slane %v1362, 1
  %v1364 = vadd.f32 %v1362, %v1363
  %v1365 = vrot.slane %v1358, 4
  %v1366 = vadd.f32 %v1358, %v1365
  %v1367 = vrot.slane %v1366, 2
  %v1368 = vadd.f32 %v1366, %v1367
  %v1369 = vrot.slane %v1368, 1
  %v1370 = vadd.f32 %v1368, %v1369
  %v1371 = vmul.f32 %v1364, 0.125
  %v1372 = vmul.f32 %v1370, 0.125
  %v1373 = vmul.f32 %v1357, %v1357
  %v1374 = vmul.f32 %v1358, %v1358
  %v1375 = vrot.slane %v1373, 4
  %v1376 = vadd.f32 %v1373, %v1375
  %v1377 = vrot.slane %v1376, 2
  %v1378 = vadd.f32 %v1376, %v1377
  %v1379 = vrot.slane %v1378, 1
  %v1380 = vadd.f32 %v1378, %v1379
  %v1381 = vrot.slane %v1374, 4
  %v1382 = vadd.f32 %v1374, %v1381
  %v1383 = vrot.slane %v1382, 2
  %v1384 = vadd.f32 %v1382, %v1383
  %v1385 = vrot.slane %v1384, 1
  %v1386 = vadd.f32 %v1384, %v1385
  %v1387 = vmul.f32 %v1380, 0.125
  %v1388 = vmul.f32 %v1386, 0.125
  %v1389 = vmul.f32 %v1371, %v1371
  %v1390 = vmul.f32 %v1372, %v1372
  %v1391 = vsub.f32 %v1387, %v1389
  %v1392 = vsub.f32 %v1388, %v1390
  %v1393 = vadd.f32 %v1391, 1e-05
  %v1394 = vadd.f32 %v1392, 1e-05
  %v1395 = vrsqrt.pop %v1393
  %v1396 = vrsqrt.pop %v1394
  %v1399 = vcombine.low %v1395, %v1396
  %v1401 = vunpack.c.l.s4 1966171168
  %v1402 = vunpack.c.0.s8 %v1401
  %v1403 = vlaneseq
  %v1404 = vshrl.u32 %v1403, 7
  %v1405 = vsub.s32 %v1402, %v1404
  %v1406 = vrot.slane %v1399, %v1405
  %v1408 = vunpack.c.l.s4 1966171168
  %v1409 = vunpack.c.0.s8 %v1408
  %v1410 = vlaneseq
  %v1411 = vshrl.u32 %v1410, 7
  %v1412 = vsub.s32 %v1409, %v1411
  %v1413 = vrot.slane %v1406, %v1412
  %v1415 = vmul.f32 %v755, %v1413
  %v1417 = vlaneseq
  %v1418 = vshrl.u32 %v1417, 7
  %v1419 = vsub.s32 0, %v1418
  %v1420 = vrot.slane %v1415, %v1419
  %v1421 = vlaneseq
  %v1422 = vshrl.u32 %v1421, 7
  %v1423 = vsub.s32 1, %v1422
  %v1424 = vrot.slane %v1415, %v1423
  %v1427 = vmul.f32 %v1371, %v1420
  %v1428 = vmul.f32 %v1372, %v1424
  %v1431 = vcombine.low %v1427, %v1428
  %v1433 = vunpack.c.l.s4 1966171168
  %v1434 = vunpack.c.0.s8 %v1433
  %v1435 = vlaneseq
  %v1436 = vshrl.u32 %v1435, 7
  %v1437 = vsub.s32 %v1434, %v1436
  %v1438 = vrot.slane %v1431, %v1437
  %v1440 = vunpack.c.l.s4 1966171168
  %v1441 = vunpack.c.0.s8 %v1440
  %v1442 = vlaneseq
  %v1443 = vshrl.u32 %v1442, 7
  %v1444 = vsub.s32 %v1441, %v1443
  %v1445 = vrot.slane %v1438, %v1444
  %v1447 = vsub.f32 %v780, %v1445
  %v1448 = vmul.f32 %v1357, %v1420
  %v1449 = vmul.f32 %v1358, %v1424
  %v1451 = vlaneseq
  %v1452 = vshrl.u32 %v1451, 7
  %v1453 = vsub.s32 0, %v1452
  %v1454 = vrot.slane %v1447, %v1453
  %v1455 = vlaneseq
  %v1456 = vshrl.u32 %v1455, 7
  %v1457 = vsub.s32 1, %v1456
  %v1458 = vrot.slane %v1447, %v1457
  %v1461 = vadd.f32 %v1448, %v1454
  %v1462 = vadd.f32 %v1449, %v1458
  %v1463 = vmax.f32 %v1461, 0.0
  %v1464 = vmax.f32 %v1462, 0.0
  %1465 = vmatprep.subr.mxu0 %v894
  %1466 = vmatpush1.xpose.msra.mxu0 %v893
  %1467 = vmatprep.subr.mxu0 %v892
  %1468 = vmatpush1.xpose.msra.mxu0 %v891
  %1469 = vmatprep.subr.mxu0 %v890
  %1470 = vmatpush1.xpose.msra.mxu0 %v889
  %1471 = vmatprep.subr.mxu0 %v888
  %1472 = vmatpush1.xpose.msra.mxu0 %v887
  %1473 = vmatprep.subr.mxu0 %v886
  %1474 = vmatpush1.xpose.msra.mxu0 %v885
  %1475 = vmatprep.subr.mxu0 %v884
  %1476 = vmatpush1.xpose.msra.mxu0 %v883
  %1477 = vmatprep.subr.mxu0 %v882
  %1478 = vmatpush1.xpose.msra.mxu0 %v881
  %1479 = vmatprep.subr.mxu0 %v880
  %1480 = vmatpush1.xpose.msra.mxu0 %v879
  %1481 = vmatprep.subr.mxu0 %v878
  %1482 = vmatpush1.xpose.msra.mxu0 %v877
  %1483 = vmatprep.subr.mxu0 %v876
  %1484 = vmatpush1.xpose.msra.mxu0 %v875
  %1485 = vmatprep.subr.mxu0 %v874
  %1486 = vmatpush1.xpose.msra.mxu0 %v873
  %1487 = vmatprep.subr.mxu0 %v872
  %1488 = vmatpush1.xpose.msra.mxu0 %v871
  %1489 = vmatprep.subr.mxu0 %v870
  %1490 = vmatpush1.xpose.msra.mxu0 %v869
  %1491 = vmatprep.subr.mxu0 %v868
  %1492 = vmatpush1.xpose.msra.mxu0 %v867
  %1493 = vmatprep.subr.mxu0 %v866
  %1494 = vmatpush1.xpose.msra.mxu0 %v865
  %1495 = vmatprep.subr.mxu0 %v864
  %1496 = vmatpush1.xpose.msra.mxu0 %v863
  %1497 = vmatprep.subr.mxu0 %v926
  %1498 = vmatpush2.xpose.msra.mxu0 %v925
  %1499 = vmatprep.subr.mxu0 %v924
  %1500 = vmatpush2.xpose.msra.mxu0 %v923
  %1501 = vmatprep.subr.mxu0 %v922
  %1502 = vmatpush2.xpose.msra.mxu0 %v921
  %1503 = vmatprep.subr.mxu0 %v920
  %1504 = vmatpush2.xpose.msra.mxu0 %v919
  %1505 = vmatprep.subr.mxu0 %v918
  %1506 = vmatpush2.xpose.msra.mxu0 %v917
  %1507 = vmatprep.subr.mxu0 %v916
  %1508 = vmatpush2.xpose.msra.mxu0 %v915
  %1509 = vmatprep.subr.mxu0 %v914
  %1510 = vmatpush2.xpose.msra.mxu0 %v913
  %1511 = vmatprep.subr.mxu0 %v912
  %1512 = vmatpush2.xpose.msra.mxu0 %v911
  %1513 = vmatprep.subr.mxu0 %v910
  %1514 = vmatpush2.xpose.msra.mxu0 %v909
  %1515 = vmatprep.subr.mxu0 %v908
  %1516 = vmatpush2.xpose.msra.mxu0 %v907
  %1517 = vmatprep.subr.mxu0 %v906
  %1518 = vmatpush2.xpose.msra.mxu0 %v905
  %1519 = vmatprep.subr.mxu0 %v904
  %1520 = vmatpush2.xpose.msra.mxu0 %v903
  %1521 = vmatprep.subr.mxu0 %v902
  %1522 = vmatpush2.xpose.msra.mxu0 %v901
  %1523 = vmatprep.subr.mxu0 %v900
  %1524 = vmatpush2.xpose.msra.mxu0 %v899
  %1525 = vmatprep.subr.mxu0 %v898
  %1526 = vmatpush2.xpose.msra.mxu0 %v897
  %1527 = vmatprep.subr.mxu0 %v896
  %1528 = vmatpush2.xpose.msra.mxu0 %v895
  %1529 = vmatprep.mubr.f32.mxu0 %v1464
  %1530 = vmatmul.mubr.f32.gmra.mxu0 %v1463
  %v1531 = vpop.f32.mrf.mxu0
  %v1532 = vadd.f32 0.0, %v1531
  %v1533 = vpop.f32.mrf.mxu0
  %v1534 = vadd.f32 0.0, %v1533
  %1535 = vdwg.mxu0
  %v1536 = vmul.f32 %v1532, %v1004
  %v1537 = vmul.f32 %v1534, %v1008
  %v1538 = vadd.f32 %v1536, %v1019
  %v1539 = vadd.f32 %v1537, %v1023
  %s1540 = scalar_lea.vmem %s1, 1024
  %v1541 = vld [vmem:[%s1540] sm:$0xff]
  %v1542 = vld [vmem:[%s1540 + $0x8] sm:$0xff]
  %v1543 = vld [vmem:[%s1540 + $0x10] sm:$0xff]
  %v1544 = vld [vmem:[%s1540 + $0x18] sm:$0xff]
  %v1545 = vld [vmem:[%s1540 + $0x20] sm:$0xff]
  %v1546 = vld [vmem:[%s1540 + $0x28] sm:$0xff]
  %v1547 = vld [vmem:[%s1540 + $0x30] sm:$0xff]
  %v1548 = vld [vmem:[%s1540 + $0x38] sm:$0xff]
  %v1549 = vld [vmem:[%s1540 + $0x40] sm:$0xff]
  %v1550 = vld [vmem:[%s1540 + $0x48] sm:$0xff]
  %v1551 = vld [vmem:[%s1540 + $0x50] sm:$0xff]
  %v1552 = vld [vmem:[%s1540 + $0x58] sm:$0xff]
  %v1553 = vld [vmem:[%s1540 + $0x60] sm:$0xff]
  %v1554 = vld [vmem:[%s1540 + $0x68] sm:$0xff]
  %v1555 = vld [vmem:[%s1540 + $0x70] sm:$0xff]
  %v1556 = vld [vmem:[%s1540 + $0x78] sm:$0xff]
  %v1557 = vld [vmem:[%s1540 + $0x80] sm:$0xff]
  %v1558 = vld [vmem:[%s1540 + $0x88] sm:$0xff]
  %v1559 = vld [vmem:[%s1540 + $0x90] sm:$0xff]
  %v1560 = vld [vmem:[%s1540 + $0x98] sm:$0xff]
  %v1561 = vld [vmem:[%s1540 + $0xa0] sm:$0xff]
  %v1562 = vld [vmem:[%s1540 + $0xa8] sm:$0xff]
  %v1563 = vld [vmem:[%s1540 + $0xb0] sm:$0xff]
  %v1564 = vld [vmem:[%s1540 + $0xb8] sm:$0xff]
  %v1565 = vld [vmem:[%s1540 + $0xc0] sm:$0xff]
  %v1566 = vld [vmem:[%s1540 + $0xc8] sm:$0xff]
  %v1567 = vld [vmem:[%s1540 + $0xd0] sm:$0xff]
  %v1568 = vld [vmem:[%s1540 + $0xd8] sm:$0xff]
  %v1569 = vld [vmem:[%s1540 + $0xe0] sm:$0xff]
  %v1570 = vld [vmem:[%s1540 + $0xe8] sm:$0xff]
  %v1571 = vld [vmem:[%s1540 + $0xf0] sm:$0xff]
  %v1572 = vld [vmem:[%s1540 + $0xf8] sm:$0xff]
  %v1573 = vunpack.c.l.bf16 %v1541
  %v1574 = vunpack.c.h.bf16 %v1541
  %v1575 = vunpack.c.l.bf16 %v1542
  %v1576 = vunpack.c.h.bf16 %v1542
  %v1577 = vunpack.c.l.bf16 %v1543
  %v1578 = vunpack.c.h.bf16 %v1543
  %v1579 = vunpack.c.l.bf16 %v1544
  %v1580 = vunpack.c.h.bf16 %v1544
  %v1581 = vunpack.c.l.bf16 %v1545
  %v1582 = vunpack.c.h.bf16 %v1545
  %v1583 = vunpack.c.l.bf16 %v1546
  %v1584 = vunpack.c.h.bf16 %v1546
  %v1585 = vunpack.c.l.bf16 %v1547
  %v1586 = vunpack.c.h.bf16 %v1547
  %v1587 = vunpack.c.l.bf16 %v1548
  %v1588 = vunpack.c.h.bf16 %v1548
  %v1589 = vunpack.c.l.bf16 %v1549
  %v1590 = vunpack.c.h.bf16 %v1549
  %v1591 = vunpack.c.l.bf16 %v1550
  %v1592 = vunpack.c.h.bf16 %v1550
  %v1593 = vunpack.c.l.bf16 %v1551
  %v1594 = vunpack.c.h.bf16 %v1551
  %v1595 = vunpack.c.l.bf16 %v1552
  %v1596 = vunpack.c.h.bf16 %v1552
  %v1597 = vunpack.c.l.bf16 %v1553
  %v1598 = vunpack.c.h.bf16 %v1553
  %v1599 = vunpack.c.l.bf16 %v1554
  %v1600 = vunpack.c.h.bf16 %v1554
  %v1601 = vunpack.c.l.bf16 %v1555
  %v1602 = vunpack.c.h.bf16 %v1555
  %v1603 = vunpack.c.l.bf16 %v1556
  %v1604 = vunpack.c.h.bf16 %v1556
  %v1605 = vunpack.c.l.bf16 %v1557
  %v1606 = vunpack.c.h.bf16 %v1557
  %v1607 = vunpack.c.l.bf16 %v1558
  %v1608 = vunpack.c.h.bf16 %v1558
  %v1609 = vunpack.c.l.bf16 %v1559
  %v1610 = vunpack.c.h.bf16 %v1559
  %v1611 = vunpack.c.l.bf16 %v1560
  %v1612 = vunpack.c.h.bf16 %v1560
  %v1613 = vunpack.c.l.bf16 %v1561
  %v1614 = vunpack.c.h.bf16 %v1561
  %v1615 = vunpack.c.l.bf16 %v1562
  %v1616 = vunpack.c.h.bf16 %v1562
  %v1617 = vunpack.c.l.bf16 %v1563
  %v1618 = vunpack.c.h.bf16 %v1563
  %v1619 = vunpack.c.l.bf16 %v1564
  %v1620 = vunpack.c.h.bf16 %v1564
  %v1621 = vunpack.c.l.bf16 %v1565
  %v1622 = vunpack.c.h.bf16 %v1565
  %v1623 = vunpack.c.l.bf16 %v1566
  %v1624 = vunpack.c.h.bf16 %v1566
  %v1625 = vunpack.c.l.bf16 %v1567
  %v1626 = vunpack.c.h.bf16 %v1567
  %v1627 = vunpack.c.l.bf16 %v1568
  %v1628 = vunpack.c.h.bf16 %v1568
  %v1629 = vunpack.c.l.bf16 %v1569
  %v1630 = vunpack.c.h.bf16 %v1569
  %v1631 = vunpack.c.l.bf16 %v1570
  %v1632 = vunpack.c.h.bf16 %v1570
  %v1633 = vunpack.c.l.bf16 %v1571
  %v1634 = vunpack.c.h.bf16 %v1571
  %v1635 = vunpack.c.l.bf16 %v1572
  %v1636 = vunpack.c.h.bf16 %v1572
  %1637 = vmatprep.subr.mxu0 %v1604
  %1638 = vmatpush1.xpose.msra.mxu0 %v1603
  %1639 = vmatprep.subr.mxu0 %v1602
  %1640 = vmatpush1.xpose.msra.mxu0 %v1601
  %1641 = vmatprep.subr.mxu0 %v1600
  %1642 = vmatpush1.xpose.msra.mxu0 %v1599
  %1643 = vmatprep.subr.mxu0 %v1598
  %1644 = vmatpush1.xpose.msra.mxu0 %v1597
  %1645 = vmatprep.subr.mxu0 %v1596
  %1646 = vmatpush1.xpose.msra.mxu0 %v1595
  %1647 = vmatprep.subr.mxu0 %v1594
  %1648 = vmatpush1.xpose.msra.mxu0 %v1593
  %1649 = vmatprep.subr.mxu0 %v1592
  %1650 = vmatpush1.xpose.msra.mxu0 %v1591
  %1651 = vmatprep.subr.mxu0 %v1590
  %1652 = vmatpush1.xpose.msra.mxu0 %v1589
  %1653 = vmatprep.subr.mxu0 %v1588
  %1654 = vmatpush1.xpose.msra.mxu0 %v1587
  %1655 = vmatprep.subr.mxu0 %v1586
  %1656 = vmatpush1.xpose.msra.mxu0 %v1585
  %1657 = vmatprep.subr.mxu0 %v1584
  %1658 = vmatpush1.xpose.msra.mxu0 %v1583
  %1659 = vmatprep.subr.mxu0 %v1582
  %1660 = vmatpush1.xpose.msra.mxu0 %v1581
  %1661 = vmatprep.subr.mxu0 %v1580
  %1662 = vmatpush1.xpose.msra.mxu0 %v1579
  %1663 = vmatprep.subr.mxu0 %v1578
  %1664 = vmatpush1.xpose.msra.mxu0 %v1577
  %1665 = vmatprep.subr.mxu0 %v1576
  %1666 = vmatpush1.xpose.msra.mxu0 %v1575
  %1667 = vmatprep.subr.mxu0 %v1574
  %1668 = vmatpush1.xpose.msra.mxu0 %v1573
  %1669 = vmatprep.subr.mxu0 %v1636
  %1670 = vmatpush2.xpose.msra.mxu0 %v1635
  %1671 = vmatprep.subr.mxu0 %v1634
  %1672 = vmatpush2.xpose.msra.mxu0 %v1633
  %1673 = vmatprep.subr.mxu0 %v1632
  %1674 = vmatpush2.xpose.msra.mxu0 %v1631
  %1675 = vmatprep.subr.mxu0 %v1630
  %1676 = vmatpush2.xpose.msra.mxu0 %v1629
  %1677 = vmatprep.subr.mxu0 %v1628
  %1678 = vmatpush2.xpose.msra.mxu0 %v1627
  %1679 = vmatprep.subr.mxu0 %v1626
  %1680 = vmatpush2.xpose.msra.mxu0 %v1625
  %1681 = vmatprep.subr.mxu0 %v1624
  %1682 = vmatpush2.xpose.msra.mxu0 %v1623
  %1683 = vmatprep.subr.mxu0 %v1622
  %1684 = vmatpush2.xpose.msra.mxu0 %v1621
  %1685 = vmatprep.subr.mxu0 %v1620
  %1686 = vmatpush2.xpose.msra.mxu0 %v1619
  %1687 = vmatprep.subr.mxu0 %v1618
  %1688 = vmatpush2.xpose.msra.mxu0 %v1617
  %1689 = vmatprep.subr.mxu0 %v1616
  %1690 = vmatpush2.xpose.msra.mxu0 %v1615
  %1691 = vmatprep.subr.mxu0 %v1614
  %1692 = vmatpush2.xpose.msra.mxu0 %v1613
  %1693 = vmatprep.subr.mxu0 %v1612
  %1694 = vmatpush2.xpose.msra.mxu0 %v1611
  %1695 = vmatprep.subr.mxu0 %v1610
  %1696 = vmatpush2.xpose.msra.mxu0 %v1609
  %1697 = vmatprep.subr.mxu0 %v1608
  %1698 = vmatpush2.xpose.msra.mxu0 %v1607
  %1699 = vmatprep.subr.mxu0 %v1606
  %1700 = vmatpush2.xpose.msra.mxu0 %v1605
  %1701 = vmatprep.mubr.f32.mxu0 %v1026
  %1702 = vmatmul.mubr.f32.gmra.mxu0 %v1027
  %v1703 = vpop.f32.mrf.mxu0
  %v1704 = vadd.f32 0.0, %v1703
  %v1705 = vpop.f32.mrf.mxu0
  %v1706 = vadd.f32 0.0, %v1705
  %1707 = vdwg.mxu0
  %s1708 = scalar_lea.vmem %s3, 4
  %v1709 = vld [vmem:[%s1708] ss:$8 sm:$0x3]
  %v1711 = vlaneseq
  %v1712 = vshrl.u32 %v1711, 7
  %v1713 = vsub.s32 0, %v1712
  %v1714 = vrot.slane %v1709, %v1713
  %v1715 = vlaneseq
  %v1716 = vshrl.u32 %v1715, 7
  %v1717 = vsub.s32 1, %v1716
  %v1718 = vrot.slane %v1709, %v1717
  %v1721 = vmul.f32 %v1704, %v1714
  %v1722 = vmul.f32 %v1706, %v1718
  %s1723 = scalar_lea.vmem %s2, 16
  %v1724 = vld [vmem:[%s1723] ss:$8 sm:$0x3]
  %v1726 = vlaneseq
  %v1727 = vshrl.u32 %v1726, 7
  %v1728 = vsub.s32 0, %v1727
  %v1729 = vrot.slane %v1724, %v1728
  %v1730 = vlaneseq
  %v1731 = vshrl.u32 %v1730, 7
  %v1732 = vsub.s32 1, %v1731
  %v1733 = vrot.slane %v1724, %v1732
  %v1736 = vadd.f32 %v1721, %v1729
  %v1737 = vadd.f32 %v1722, %v1733
  %v1738 = vrot.slane %v1736, 4
  %v1739 = vadd.f32 %v1736, %v1738
  %v1740 = vrot.slane %v1739, 2
  %v1741 = vadd.f32 %v1739, %v1740
  %v1742 = vrot.slane %v1741, 1
  %v1743 = vadd.f32 %v1741, %v1742
  %v1744 = vrot.slane %v1737, 4
  %v1745 = vadd.f32 %v1737, %v1744
  %v1746 = vrot.slane %v1745, 2
  %v1747 = vadd.f32 %v1745, %v1746
  %v1748 = vrot.slane %v1747, 1
  %v1749 = vadd.f32 %v1747, %v1748
  %v1750 = vmul.f32 %v1743, 0.125
  %v1751 = vmul.f32 %v1749, 0.125
  %v1752 = vmul.f32 %v1736, %v1736
  %v1753 = vmul.f32 %v1737, %v1737
  %v1754 = vrot.slane %v1752, 4
  %v1755 = vadd.f32 %v1752, %v1754
  %v1756 = vrot.slane %v1755, 2
  %v1757 = vadd.f32 %v1755, %v1756
  %v1758 = vrot.slane %v1757, 1
  %v1759 = vadd.f32 %v1757, %v1758
  %v1760 = vrot.slane %v1753, 4
  %v1761 = vadd.f32 %v1753, %v1760
  %v1762 = vrot.slane %v1761, 2
  %v1763 = vadd.f32 %v1761, %v1762
  %v1764 = vrot.slane %v1763, 1
  %v1765 = vadd.f32 %v1763, %v1764
  %v1766 = vmul.f32 %v1759, 0.125
  %v1767 = vmul.f32 %v1765, 0.125
  %v1768 = vmul.f32 %v1750, %v1750
  %v1769 = vmul.f32 %v1751, %v1751
  %v1770 = vsub.f32 %v1766, %v1768
  %v1771 = vsub.f32 %v1767, %v1769
  %s1772 = scalar_lea.vmem %s2, 17
  %v1773 = vld [vmem:[%s1772] ss:$8 sm:$0x3]
  %v1774 = vadd.f32 %v1770, 1e-05
  %v1775 = vadd.f32 %v1771, 1e-05
  %v1776 = vrsqrt.pop %v1774
  %v1777 = vrsqrt.pop %v1775
  %v1780 = vcombine.low %v1776, %v1777
  %v1782 = vunpack.c.l.s4 1966171168
  %v1783 = vunpack.c.0.s8 %v1782
  %v1784 = vlaneseq
  %v1785 = vshrl.u32 %v1784, 7
  %v1786 = vsub.s32 %v1783, %v1785
  %v1787 = vrot.slane %v1780, %v1786
  %v1789 = vunpack.c.l.s4 1966171168
  %v1790 = vunpack.c.0.s8 %v1789
  %v1791 = vlaneseq
  %v1792 = vshrl.u32 %v1791, 7
  %v1793 = vsub.s32 %v1790, %v1792
  %v1794 = vrot.slane %v1787, %v1793
  %v1796 = vmul.f32 %v1773, %v1794
  %s1797 = scalar_lea.vmem %s2, 18
  %v1798 = vld [vmem:[%s1797] ss:$8 sm:$0x3]
  %v1800 = vlaneseq
  %v1801 = vshrl.u32 %v1800, 7
  %v1802 = vsub.s32 0, %v1801
  %v1803 = vrot.slane %v1796, %v1802
  %v1804 = vlaneseq
  %v1805 = vshrl.u32 %v1804, 7
  %v1806 = vsub.s32 1, %v1805
  %v1807 = vrot.slane %v1796, %v1806
  %v1810 = vmul.f32 %v1750, %v1803
  %v1811 = vmul.f32 %v1751, %v1807
  %v1814 = vcombine.low %v1810, %v1811
  %v1816 = vunpack.c.l.s4 1966171168
  %v1817 = vunpack.c.0.s8 %v1816
  %v1818 = vlaneseq
  %v1819 = vshrl.u32 %v1818, 7
  %v1820 = vsub.s32 %v1817, %v1819
  %v1821 = vrot.slane %v1814, %v1820
  %v1823 = vunpack.c.l.s4 1966171168
  %v1824 = vunpack.c.0.s8 %v1823
  %v1825 = vlaneseq
  %v1826 = vshrl.u32 %v1825, 7
  %v1827 = vsub.s32 %v1824, %v1826
  %v1828 = vrot.slane %v1821, %v1827
  %v1830 = vsub.f32 %v1798, %v1828
  %v1831 = vmul.f32 %v1736, %v1803
  %v1832 = vmul.f32 %v1737, %v1807
  %v1834 = vlaneseq
  %v1835 = vshrl.u32 %v1834, 7
  %v1836 = vsub.s32 0, %v1835
  %v1837 = vrot.slane %v1830, %v1836
  %v1838 = vlaneseq
  %v1839 = vshrl.u32 %v1838, 7
  %v1840 = vsub.s32 1, %v1839
  %v1841 = vrot.slane %v1830, %v1840
  %v1844 = vadd.f32 %v1831, %v1837
  %v1845 = vadd.f32 %v1832, %v1841
  %v1846 = vmax.f32 %v1844, 0.0
  %v1847 = vmax.f32 %v1845, 0.0
  %s1848 = scalar_lea.vmem %s1, 1280
  %v1849 = vld [vmem:[%s1848] sm:$0xff]
  %v1850 = vld [vmem:[%s1848 + $0x8] sm:$0xff]
  %v1851 = vld [vmem:[%s1848 + $0x10] sm:$0xff]
  %v1852 = vld [vmem:[%s1848 + $0x18] sm:$0xff]
  %v1853 = vld [vmem:[%s1848 + $0x20] sm:$0xff]
  %v1854 = vld [vmem:[%s1848 + $0x28] sm:$0xff]
  %v1855 = vld [vmem:[%s1848 + $0x30] sm:$0xff]
  %v1856 = vld [vmem:[%s1848 + $0x38] sm:$0xff]
  %v1857 = vld [vmem:[%s1848 + $0x40] sm:$0xff]
  %v1858 = vld [vmem:[%s1848 + $0x48] sm:$0xff]
  %v1859 = vld [vmem:[%s1848 + $0x50] sm:$0xff]
  %v1860 = vld [vmem:[%s1848 + $0x58] sm:$0xff]
  %v1861 = vld [vmem:[%s1848 + $0x60] sm:$0xff]
  %v1862 = vld [vmem:[%s1848 + $0x68] sm:$0xff]
  %v1863 = vld [vmem:[%s1848 + $0x70] sm:$0xff]
  %v1864 = vld [vmem:[%s1848 + $0x78] sm:$0xff]
  %v1865 = vld [vmem:[%s1848 + $0x80] sm:$0xff]
  %v1866 = vld [vmem:[%s1848 + $0x88] sm:$0xff]
  %v1867 = vld [vmem:[%s1848 + $0x90] sm:$0xff]
  %v1868 = vld [vmem:[%s1848 + $0x98] sm:$0xff]
  %v1869 = vld [vmem:[%s1848 + $0xa0] sm:$0xff]
  %v1870 = vld [vmem:[%s1848 + $0xa8] sm:$0xff]
  %v1871 = vld [vmem:[%s1848 + $0xb0] sm:$0xff]
  %v1872 = vld [vmem:[%s1848 + $0xb8] sm:$0xff]
  %v1873 = vld [vmem:[%s1848 + $0xc0] sm:$0xff]
  %v1874 = vld [vmem:[%s1848 + $0xc8] sm:$0xff]
  %v1875 = vld [vmem:[%s1848 + $0xd0] sm:$0xff]
  %v1876 = vld [vmem:[%s1848 + $0xd8] sm:$0xff]
  %v1877 = vld [vmem:[%s1848 + $0xe0] sm:$0xff]
  %v1878 = vld [vmem:[%s1848 + $0xe8] sm:$0xff]
  %v1879 = vld [vmem:[%s1848 + $0xf0] sm:$0xff]
  %v1880 = vld [vmem:[%s1848 + $0xf8] sm:$0xff]
  %v1881 = vunpack.c.l.bf16 %v1849
  %v1882 = vunpack.c.h.bf16 %v1849
  %v1883 = vunpack.c.l.bf16 %v1850
  %v1884 = vunpack.c.h.bf16 %v1850
  %v1885 = vunpack.c.l.bf16 %v1851
  %v1886 = vunpack.c.h.bf16 %v1851
  %v1887 = vunpack.c.l.bf16 %v1852
  %v1888 = vunpack.c.h.bf16 %v1852
  %v1889 = vunpack.c.l.bf16 %v1853
  %v1890 = vunpack.c.h.bf16 %v1853
  %v1891 = vunpack.c.l.bf16 %v1854
  %v1892 = vunpack.c.h.bf16 %v1854
  %v1893 = vunpack.c.l.bf16 %v1855
  %v1894 = vunpack.c.h.bf16 %v1855
  %v1895 = vunpack.c.l.bf16 %v1856
  %v1896 = vunpack.c.h.bf16 %v1856
  %v1897 = vunpack.c.l.bf16 %v1857
  %v1898 = vunpack.c.h.bf16 %v1857
  %v1899 = vunpack.c.l.bf16 %v1858
  %v1900 = vunpack.c.h.bf16 %v1858
  %v1901 = vunpack.c.l.bf16 %v1859
  %v1902 = vunpack.c.h.bf16 %v1859
  %v1903 = vunpack.c.l.bf16 %v1860
  %v1904 = vunpack.c.h.bf16 %v1860
  %v1905 = vunpack.c.l.bf16 %v1861
  %v1906 = vunpack.c.h.bf16 %v1861
  %v1907 = vunpack.c.l.bf16 %v1862
  %v1908 = vunpack.c.h.bf16 %v1862
  %v1909 = vunpack.c.l.bf16 %v1863
  %v1910 = vunpack.c.h.bf16 %v1863
  %v1911 = vunpack.c.l.bf16 %v1864
  %v1912 = vunpack.c.h.bf16 %v1864
  %v1913 = vunpack.c.l.bf16 %v1865
  %v1914 = vunpack.c.h.bf16 %v1865
  %v1915 = vunpack.c.l.bf16 %v1866
  %v1916 = vunpack.c.h.bf16 %v1866
  %v1917 = vunpack.c.l.bf16 %v1867
  %v1918 = vunpack.c.h.bf16 %v1867
  %v1919 = vunpack.c.l.bf16 %v1868
  %v1920 = vunpack.c.h.bf16 %v1868
  %v1921 = vunpack.c.l.bf16 %v1869
  %v1922 = vunpack.c.h.bf16 %v1869
  %v1923 = vunpack.c.l.bf16 %v1870
  %v1924 = vunpack.c.h.bf16 %v1870
  %v1925 = vunpack.c.l.bf16 %v1871
  %v1926 = vunpack.c.h.bf16 %v1871
  %v1927 = vunpack.c.l.bf16 %v1872
  %v1928 = vunpack.c.h.bf16 %v1872
  %v1929 = vunpack.c.l.bf16 %v1873
  %v1930 = vunpack.c.h.bf16 %v1873
  %v1931 = vunpack.c.l.bf16 %v1874
  %v1932 = vunpack.c.h.bf16 %v1874
  %v1933 = vunpack.c.l.bf16 %v1875
  %v1934 = vunpack.c.h.bf16 %v1875
  %v1935 = vunpack.c.l.bf16 %v1876
  %v1936 = vunpack.c.h.bf16 %v1876
  %v1937 = vunpack.c.l.bf16 %v1877
  %v1938 = vunpack.c.h.bf16 %v1877
  %v1939 = vunpack.c.l.bf16 %v1878
  %v1940 = vunpack.c.h.bf16 %v1878
  %v1941 = vunpack.c.l.bf16 %v1879
  %v1942 = vunpack.c.h.bf16 %v1879
  %v1943 = vunpack.c.l.bf16 %v1880
  %v1944 = vunpack.c.h.bf16 %v1880
  %1945 = vmatprep.subr.mxu0 %v1912
  %1946 = vmatpush1.xpose.msra.mxu0 %v1911
  %1947 = vmatprep.subr.mxu0 %v1910
  %1948 = vmatpush1.xpose.msra.mxu0 %v1909
  %1949 = vmatprep.subr.mxu0 %v1908
  %1950 = vmatpush1.xpose.msra.mxu0 %v1907
  %1951 = vmatprep.subr.mxu0 %v1906
  %1952 = vmatpush1.xpose.msra.mxu0 %v1905
  %1953 = vmatprep.subr.mxu0 %v1904
  %1954 = vmatpush1.xpose.msra.mxu0 %v1903
  %1955 = vmatprep.subr.mxu0 %v1902
  %1956 = vmatpush1.xpose.msra.mxu0 %v1901
  %1957 = vmatprep.subr.mxu0 %v1900
  %1958 = vmatpush1.xpose.msra.mxu0 %v1899
  %1959 = vmatprep.subr.mxu0 %v1898
  %1960 = vmatpush1.xpose.msra.mxu0 %v1897
  %1961 = vmatprep.subr.mxu0 %v1896
  %1962 = vmatpush1.xpose.msra.mxu0 %v1895
  %1963 = vmatprep.subr.mxu0 %v1894
  %1964 = vmatpush1.xpose.msra.mxu0 %v1893
  %1965 = vmatprep.subr.mxu0 %v1892
  %1966 = vmatpush1.xpose.msra.mxu0 %v1891
  %1967 = vmatprep.subr.mxu0 %v1890
  %1968 = vmatpush1.xpose.msra.mxu0 %v1889
  %1969 = vmatprep.subr.mxu0 %v1888
  %1970 = vmatpush1.xpose.msra.mxu0 %v1887
  %1971 = vmatprep.subr.mxu0 %v1886
  %1972 = vmatpush1.xpose.msra.mxu0 %v1885
  %1973 = vmatprep.subr.mxu0 %v1884
  %1974 = vmatpush1.xpose.msra.mxu0 %v1883
  %1975 = vmatprep.subr.mxu0 %v1882
  %1976 = vmatpush1.xpose.msra.mxu0 %v1881
  %1977 = vmatprep.subr.mxu0 %v1944
  %1978 = vmatpush2.xpose.msra.mxu0 %v1943
  %1979 = vmatprep.subr.mxu0 %v1942
  %1980 = vmatpush2.xpose.msra.mxu0 %v1941
  %1981 = vmatprep.subr.mxu0 %v1940
  %1982 = vmatpush2.xpose.msra.mxu0 %v1939
  %1983 = vmatprep.subr.mxu0 %v1938
  %1984 = vmatpush2.xpose.msra.mxu0 %v1937
  %1985 = vmatprep.subr.mxu0 %v1936
  %1986 = vmatpush2.xpose.msra.mxu0 %v1935
  %1987 = vmatprep.subr.mxu0 %v1934
  %1988 = vmatpush2.xpose.msra.mxu0 %v1933
  %1989 = vmatprep.subr.mxu0 %v1932
  %1990 = vmatpush2.xpose.msra.mxu0 %v1931
  %1991 = vmatprep.subr.mxu0 %v1930
  %1992 = vmatpush2.xpose.msra.mxu0 %v1929
  %1993 = vmatprep.subr.mxu0 %v1928
  %1994 = vmatpush2.xpose.msra.mxu0 %v1927
  %1995 = vmatprep.subr.mxu0 %v1926
  %1996 = vmatpush2.xpose.msra.mxu0 %v1925
  %1997 = vmatprep.subr.mxu0 %v1924
  %1998 = vmatpush2.xpose.msra.mxu0 %v1923
  %1999 = vmatprep.subr.mxu0 %v1922
  %2000 = vmatpush2.xpose.msra.mxu0 %v1921
  %2001 = vmatprep.subr.mxu0 %v1920
  %2002 = vmatpush2.xpose.msra.mxu0 %v1919
  %2003 = vmatprep.subr.mxu0 %v1918
  %2004 = vmatpush2.xpose.msra.mxu0 %v1917
  %2005 = vmatprep.subr.mxu0 %v1916
  %2006 = vmatpush2.xpose.msra.mxu0 %v1915
  %2007 = vmatprep.subr.mxu0 %v1914
  %2008 = vmatpush2.xpose.msra.mxu0 %v1913
  %2009 = vmatprep.mubr.f32.mxu0 %v1847
  %2010 = vmatmul.mubr.f32.gmra.mxu0 %v1846
  %v2011 = vpop.f32.mrf.mxu0
  %v2012 = vadd.f32 0.0, %v2011
  %v2013 = vpop.f32.mrf.mxu0
  %v2014 = vadd.f32 0.0, %v2013
  %2015 = vdwg.mxu0
  %s2016 = scalar_lea.vmem %s3, 5
  %v2017 = vld [vmem:[%s2016] ss:$8 sm:$0x3]
  %v2019 = vlaneseq
  %v2020 = vshrl.u32 %v2019, 7
  %v2021 = vsub.s32 0, %v2020
  %v2022 = vrot.slane %v2017, %v2021
  %v2023 = vlaneseq
  %v2024 = vshrl.u32 %v2023, 7
  %v2025 = vsub.s32 1, %v2024
  %v2026 = vrot.slane %v2017, %v2025
  %v2029 = vmul.f32 %v2012, %v2022
  %v2030 = vmul.f32 %v2014, %v2026
  %s2031 = scalar_lea.vmem %s2, 19
  %v2032 = vld [vmem:[%s2031] ss:$8 sm:$0x3]
  %v2034 = vlaneseq
  %v2035 = vshrl.u32 %v2034, 7
  %v2036 = vsub.s32 0, %v2035
  %v2037 = vrot.slane %v2032, %v2036
  %v2038 = vlaneseq
  %v2039 = vshrl.u32 %v2038, 7
  %v2040 = vsub.s32 1, %v2039
  %v2041 = vrot.slane %v2032, %v2040
  %v2044 = vadd.f32 %v2029, %v2037
  %v2045 = vadd.f32 %v2030, %v2041
  %v2046 = vrot.slane %v2044, 4
  %v2047 = vadd.f32 %v2044, %v2046
  %v2048 = vrot.slane %v2047, 2
  %v2049 = vadd.f32 %v2047, %v2048
  %v2050 = vrot.slane %v2049, 1
  %v2051 = vadd.f32 %v2049, %v2050
  %v2052 = vrot.slane %v2045, 4
  %v2053 = vadd.f32 %v2045, %v2052
  %v2054 = vrot.slane %v2053, 2
  %v2055 = vadd.f32 %v2053, %v2054
  %v2056 = vrot.slane %v2055, 1
  %v2057 = vadd.f32 %v2055, %v2056
  %v2058 = vmul.f32 %v2051, 0.125
  %v2059 = vmul.f32 %v2057, 0.125
  %v2060 = vmul.f32 %v2044, %v2044
  %v2061 = vmul.f32 %v2045, %v2045
  %v2062 = vrot.slane %v2060, 4
  %v2063 = vadd.f32 %v2060, %v2062
  %v2064 = vrot.slane %v2063, 2
  %v2065 = vadd.f32 %v2063, %v2064
  %v2066 = vrot.slane %v2065, 1
  %v2067 = vadd.f32 %v2065, %v2066
  %v2068 = vrot.slane %v2061, 4
  %v2069 = vadd.f32 %v2061, %v2068
  %v2070 = vrot.slane %v2069, 2
  %v2071 = vadd.f32 %v2069, %v2070
  %v2072 = vrot.slane %v2071, 1
  %v2073 = vadd.f32 %v2071, %v2072
  %v2074 = vmul.f32 %v2067, 0.125
  %v2075 = vmul.f32 %v2073, 0.125
  %v2076 = vmul.f32 %v2058, %v2058
  %v2077 = vmul.f32 %v2059, %v2059
  %v2078 = vsub.f32 %v2074, %v2076
  %v2079 = vsub.f32 %v2075, %v2077
  %s2080 = scalar_lea.vmem %s2, 20
  %v2081 = vld [vmem:[%s2080] ss:$8 sm:$0x3]
  %v2082 = vadd.f32 %v2078, 1e-05
  %v2083 = vadd.f32 %v2079, 1e-05
  %v2084 = vrsqrt.pop %v2082
  %v2085 = vrsqrt.pop %v2083
  %v2088 = vcombine.low %v2084, %v2085
  %v2090 = vunpack.c.l.s4 1966171168
  %v2091 = vunpack.c.0.s8 %v2090
  %v2092 = vlaneseq
  %v2093 = vshrl.u32 %v2092, 7
  %v2094 = vsub.s32 %v2091, %v2093
  %v2095 = vrot.slane %v2088, %v2094
  %v2097 = vunpack.c.l.s4 1966171168
  %v2098 = vunpack.c.0.s8 %v2097
  %v2099 = vlaneseq
  %v2100 = vshrl.u32 %v2099, 7
  %v2101 = vsub.s32 %v2098, %v2100
  %v2102 = vrot.slane %v2095, %v2101
  %v2104 = vmul.f32 %v2081, %v2102
  %s2105 = scalar_lea.vmem %s2, 21
  %v2106 = vld [vmem:[%s2105] ss:$8 sm:$0x3]
  %v2108 = vlaneseq
  %v2109 = vshrl.u32 %v2108, 7
  %v2110 = vsub.s32 0, %v2109
  %v2111 = vrot.slane %v2104, %v2110
  %v2112 = vlaneseq
  %v2113 = vshrl.u32 %v2112, 7
  %v2114 = vsub.s32 1, %v2113
  %v2115 = vrot.slane %v2104, %v2114
  %v2118 = vmul.f32 %v2058, %v2111
  %v2119 = vmul.f32 %v2059, %v2115
  %v2122 = vcombine.low %v2118, %v2119
  %v2124 = vunpack.c.l.s4 1966171168
  %v2125 = vunpack.c.0.s8 %v2124
  %v2126 = vlaneseq
  %v2127 = vshrl.u32 %v2126, 7
  %v2128 = vsub.s32 %v2125, %v2127
  %v2129 = vrot.slane %v2122, %v2128
  %v2131 = vunpack.c.l.s4 1966171168
  %v2132 = vunpack.c.0.s8 %v2131
  %v2133 = vlaneseq
  %v2134 = vshrl.u32 %v2133, 7
  %v2135 = vsub.s32 %v2132, %v2134
  %v2136 = vrot.slane %v2129, %v2135
  %v2138 = vsub.f32 %v2106, %v2136
  %v2139 = vmul.f32 %v2044, %v2111
  %v2140 = vmul.f32 %v2045, %v2115
  %v2142 = vlaneseq
  %v2143 = vshrl.u32 %v2142, 7
  %v2144 = vsub.s32 0, %v2143
  %v2145 = vrot.slane %v2138, %v2144
  %v2146 = vlaneseq
  %v2147 = vshrl.u32 %v2146, 7
  %v2148 = vsub.s32 1, %v2147
  %v2149 = vrot.slane %v2138, %v2148
  %v2152 = vadd.f32 %v2139, %v2145
  %v2153 = vadd.f32 %v2140, %v2149
  %v2154 = vmax.f32 %v2152, 0.0
  %v2155 = vmax.f32 %v2153, 0.0
  %s2156 = scalar_lea.vmem %s1, 1536
  %v2157 = vld [vmem:[%s2156] sm:$0xff]
  %v2158 = vld [vmem:[%s2156 + $0x8] sm:$0xff]
  %v2159 = vld [vmem:[%s2156 + $0x10] sm:$0xff]
  %v2160 = vld [vmem:[%s2156 + $0x18] sm:$0xff]
  %v2161 = vld [vmem:[%s2156 + $0x20] sm:$0xff]
  %v2162 = vld [vmem:[%s2156 + $0x28] sm:$0xff]
  %v2163 = vld [vmem:[%s2156 + $0x30] sm:$0xff]
  %v2164 = vld [vmem:[%s2156 + $0x38] sm:$0xff]
  %v2165 = vld [vmem:[%s2156 + $0x40] sm:$0xff]
  %v2166 = vld [vmem:[%s2156 + $0x48] sm:$0xff]
  %v2167 = vld [vmem:[%s2156 + $0x50] sm:$0xff]
  %v2168 = vld [vmem:[%s2156 + $0x58] sm:$0xff]
  %v2169 = vld [vmem:[%s2156 + $0x60] sm:$0xff]
  %v2170 = vld [vmem:[%s2156 + $0x68] sm:$0xff]
  %v2171 = vld [vmem:[%s2156 + $0x70] sm:$0xff]
  %v2172 = vld [vmem:[%s2156 + $0x78] sm:$0xff]
  %v2173 = vld [vmem:[%s2156 + $0x80] sm:$0xff]
  %v2174 = vld [vmem:[%s2156 + $0x88] sm:$0xff]
  %v2175 = vld [vmem:[%s2156 + $0x90] sm:$0xff]
  %v2176 = vld [vmem:[%s2156 + $0x98] sm:$0xff]
  %v2177 = vld [vmem:[%s2156 + $0xa0] sm:$0xff]
  %v2178 = vld [vmem:[%s2156 + $0xa8] sm:$0xff]
  %v2179 = vld [vmem:[%s2156 + $0xb0] sm:$0xff]
  %v2180 = vld [vmem:[%s2156 + $0xb8] sm:$0xff]
  %v2181 = vld [vmem:[%s2156 + $0xc0] sm:$0xff]
  %v2182 = vld [vmem:[%s2156 + $0xc8] sm:$0xff]
  %v2183 = vld [vmem:[%s2156 + $0xd0] sm:$0xff]
  %v2184 = vld [vmem:[%s2156 + $0xd8] sm:$0xff]
  %v2185 = vld [vmem:[%s2156 + $0xe0] sm:$0xff]
  %v2186 = vld [vmem:[%s2156 + $0xe8] sm:$0xff]
  %v2187 = vld [vmem:[%s2156 + $0xf0] sm:$0xff]
  %v2188 = vld [vmem:[%s2156 + $0xf8] sm:$0xff]
  %v2189 = vunpack.c.l.bf16 %v2157
  %v2190 = vunpack.c.h.bf16 %v2157
  %v2191 = vunpack.c.l.bf16 %v2158
  %v2192 = vunpack.c.h.bf16 %v2158
  %v2193 = vunpack.c.l.bf16 %v2159
  %v2194 = vunpack.c.h.bf16 %v2159
  %v2195 = vunpack.c.l.bf16 %v2160
  %v2196 = vunpack.c.h.bf16 %v2160
  %v2197 = vunpack.c.l.bf16 %v2161
  %v2198 = vunpack.c.h.bf16 %v2161
  %v2199 = vunpack.c.l.bf16 %v2162
  %v2200 = vunpack.c.h.bf16 %v2162
  %v2201 = vunpack.c.l.bf16 %v2163
  %v2202 = vunpack.c.h.bf16 %v2163
  %v2203 = vunpack.c.l.bf16 %v2164
  %v2204 = vunpack.c.h.bf16 %v2164
  %v2205 = vunpack.c.l.bf16 %v2165
  %v2206 = vunpack.c.h.bf16 %v2165
  %v2207 = vunpack.c.l.bf16 %v2166
  %v2208 = vunpack.c.h.bf16 %v2166
  %v2209 = vunpack.c.l.bf16 %v2167
  %v2210 = vunpack.c.h.bf16 %v2167
  %v2211 = vunpack.c.l.bf16 %v2168
  %v2212 = vunpack.c.h.bf16 %v2168
  %v2213 = vunpack.c.l.bf16 %v2169
  %v2214 = vunpack.c.h.bf16 %v2169
  %v2215 = vunpack.c.l.bf16 %v2170
  %v2216 = vunpack.c.h.bf16 %v2170
  %v2217 = vunpack.c.l.bf16 %v2171
  %v2218 = vunpack.c.h.bf16 %v2171
  %v2219 = vunpack.c.l.bf16 %v2172
  %v2220 = vunpack.c.h.bf16 %v2172
  %v2221 = vunpack.c.l.bf16 %v2173
  %v2222 = vunpack.c.h.bf16 %v2173
  %v2223 = vunpack.c.l.bf16 %v2174
  %v2224 = vunpack.c.h.bf16 %v2174
  %v2225 = vunpack.c.l.bf16 %v2175
  %v2226 = vunpack.c.h.bf16 %v2175
  %v2227 = vunpack.c.l.bf16 %v2176
  %v2228 = vunpack.c.h.bf16 %v2176
  %v2229 = vunpack.c.l.bf16 %v2177
  %v2230 = vunpack.c.h.bf16 %v2177
  %v2231 = vunpack.c.l.bf16 %v2178
  %v2232 = vunpack.c.h.bf16 %v2178
  %v2233 = vunpack.c.l.bf16 %v2179
  %v2234 = vunpack.c.h.bf16 %v2179
  %v2235 = vunpack.c.l.bf16 %v2180
  %v2236 = vunpack.c.h.bf16 %v2180
  %v2237 = vunpack.c.l.bf16 %v2181
  %v2238 = vunpack.c.h.bf16 %v2181
  %v2239 = vunpack.c.l.bf16 %v2182
  %v2240 = vunpack.c.h.bf16 %v2182
  %v2241 = vunpack.c.l.bf16 %v2183
  %v2242 = vunpack.c.h.bf16 %v2183
  %v2243 = vunpack.c.l.bf16 %v2184
  %v2244 = vunpack.c.h.bf16 %v2184
  %v2245 = vunpack.c.l.bf16 %v2185
  %v2246 = vunpack.c.h.bf16 %v2185
  %v2247 = vunpack.c.l.bf16 %v2186
  %v2248 = vunpack.c.h.bf16 %v2186
  %v2249 = vunpack.c.l.bf16 %v2187
  %v2250 = vunpack.c.h.bf16 %v2187
  %v2251 = vunpack.c.l.bf16 %v2188
  %v2252 = vunpack.c.h.bf16 %v2188
  %2253 = vmatprep.subr.mxu0 %v2220
  %2254 = vmatpush1.xpose.msra.mxu0 %v2219
  %2255 = vmatprep.subr.mxu0 %v2218
  %2256 = vmatpush1.xpose.msra.mxu0 %v2217
  %2257 = vmatprep.subr.mxu0 %v2216
  %2258 = vmatpush1.xpose.msra.mxu0 %v2215
  %2259 = vmatprep.subr.mxu0 %v2214
  %2260 = vmatpush1.xpose.msra.mxu0 %v2213
  %2261 = vmatprep.subr.mxu0 %v2212
  %2262 = vmatpush1.xpose.msra.mxu0 %v2211
  %2263 = vmatprep.subr.mxu0 %v2210
  %2264 = vmatpush1.xpose.msra.mxu0 %v2209
  %2265 = vmatprep.subr.mxu0 %v2208
  %2266 = vmatpush1.xpose.msra.mxu0 %v2207
  %2267 = vmatprep.subr.mxu0 %v2206
  %2268 = vmatpush1.xpose.msra.mxu0 %v2205
  %2269 = vmatprep.subr.mxu0 %v2204
  %2270 = vmatpush1.xpose.msra.mxu0 %v2203
  %2271 = vmatprep.subr.mxu0 %v2202
  %2272 = vmatpush1.xpose.msra.mxu0 %v2201
  %2273 = vmatprep.subr.mxu0 %v2200
  %2274 = vmatpush1.xpose.msra.mxu0 %v2199
  %2275 = vmatprep.subr.mxu0 %v2198
  %2276 = vmatpush1.xpose.msra.mxu0 %v2197
  %2277 = vmatprep.subr.mxu0 %v2196
  %2278 = vmatpush1.xpose.msra.mxu0 %v2195
  %2279 = vmatprep.subr.mxu0 %v2194
  %2280 = vmatpush1.xpose.msra.mxu0 %v2193
  %2281 = vmatprep.subr.mxu0 %v2192
  %2282 = vmatpush1.xpose.msra.mxu0 %v2191
  %2283 = vmatprep.subr.mxu0 %v2190
  %2284 = vmatpush1.xpose.msra.mxu0 %v2189
  %2285 = vmatprep.subr.mxu0 %v2252
  %2286 = vmatpush2.xpose.msra.mxu0 %v2251
  %2287 = vmatprep.subr.mxu0 %v2250
  %2288 = vmatpush2.xpose.msra.mxu0 %v2249
  %2289 = vmatprep.subr.mxu0 %v2248
  %2290 = vmatpush2.xpose.msra.mxu0 %v2247
  %2291 = vmatprep.subr.mxu0 %v2246
  %2292 = vmatpush2.xpose.msra.mxu0 %v2245
  %2293 = vmatprep.subr.mxu0 %v2244
  %2294 = vmatpush2.xpose.msra.mxu0 %v2243
  %2295 = vmatprep.subr.mxu0 %v2242
  %2296 = vmatpush2.xpose.msra.mxu0 %v2241
  %2297 = vmatprep.subr.mxu0 %v2240
  %2298 = vmatpush2.xpose.msra.mxu0 %v2239
  %2299 = vmatprep.subr.mxu0 %v2238
  %2300 = vmatpush2.xpose.msra.mxu0 %v2237
  %2301 = vmatprep.subr.mxu0 %v2236
  %2302 = vmatpush2.xpose.msra.mxu0 %v2235
  %2303 = vmatprep.subr.mxu0 %v2234
  %2304 = vmatpush2.xpose.msra.mxu0 %v2233
  %2305 = vmatprep.subr.mxu0 %v2232
  %2306 = vmatpush2.xpose.msra.mxu0 %v2231
  %2307 = vmatprep.subr.mxu0 %v2230
  %2308 = vmatpush2.xpose.msra.mxu0 %v2229
  %2309 = vmatprep.subr.mxu0 %v2228
  %2310 = vmatpush2.xpose.msra.mxu0 %v2227
  %2311 = vmatprep.subr.mxu0 %v2226
  %2312 = vmatpush2.xpose.msra.mxu0 %v2225
  %2313 = vmatprep.subr.mxu0 %v2224
  %2314 = vmatpush2.xpose.msra.mxu0 %v2223
  %2315 = vmatprep.subr.mxu0 %v2222
  %2316 = vmatpush2.xpose.msra.mxu0 %v2221
  %2317 = vmatprep.mubr.f32.mxu0 %v2155
  %2318 = vmatmul.mubr.f32.gmra.mxu0 %v2154
  %v2319 = vpop.f32.mrf.mxu0
  %v2320 = vadd.f32 0.0, %v2319
  %v2321 = vpop.f32.mrf.mxu0
  %v2322 = vadd.f32 0.0, %v2321
  %2323 = vdwg.mxu0
  %s2324 = scalar_lea.vmem %s3, 6
  %v2325 = vld [vmem:[%s2324] ss:$8 sm:$0x3]
  %v2327 = vlaneseq
  %v2328 = vshrl.u32 %v2327, 7
  %v2329 = vsub.s32 0, %v2328
  %v2330 = vrot.slane %v2325, %v2329
  %v2331 = vlaneseq
  %v2332 = vshrl.u32 %v2331, 7
  %v2333 = vsub.s32 1, %v2332
  %v2334 = vrot.slane %v2325, %v2333
  %v2337 = vmul.f32 %v2320, %v2330
  %v2338 = vmul.f32 %v2322, %v2334
  %s2339 = scalar_lea.vmem %s2, 22
  %v2340 = vld [vmem:[%s2339] ss:$8 sm:$0x3]
  %v2342 = vlaneseq
  %v2343 = vshrl.u32 %v2342, 7
  %v2344 = vsub.s32 0, %v2343
  %v2345 = vrot.slane %v2340, %v2344
  %v2346 = vlaneseq
  %v2347 = vshrl.u32 %v2346, 7
  %v2348 = vsub.s32 1, %v2347
  %v2349 = vrot.slane %v2340, %v2348
  %v2352 = vadd.f32 %v2337, %v2345
  %v2353 = vadd.f32 %v2338, %v2349
  %2354 = vst [vmem:[%s4] sm:$0xff] %v1026
  %2355 = vst [vmem:[%s4 + $0x8] sm:$0xff] %v1027
  %s2356 = scalar_lea.vmem %s4, 16
  %2357 = vst [vmem:[%s2356] sm:$0xff] %v1538
  %2358 = vst [vmem:[%s2356 + $0x8] sm:$0xff] %v1539
  %s2359 = scalar_lea.vmem %s4, 32
  %2360 = vst [vmem:[%s2359] sm:$0xff] %v2352
  %2361 = vst [vmem:[%s2359 + $0x8] sm:$0xff] %v2353
  // Predicated region
  $region18: #{cyclegan_forward.1} parent=0 // pred_check
    _
  $region19: #{cyclegan_forward.1} parent=0 // pred_check_branch
    %2363 = sbr.rel (0) target = $region21
  $region20: #{cyclegan_forward.1} parent=0 // pred_region
    _
  $region21: #{cyclegan_forward.1} parent=0 // pred_fallthru
    _
  // Predicated region
  $region22: #{cyclegan_forward.1} parent=0 // pred_check
    _
  $region23: #{cyclegan_forward.1} parent=0 // pred_check_branch
    %2365 = sbr.rel (0) target = $region25
  $region24: #{cyclegan_forward.1} parent=0 // pred_region
    _
  $region25: #{cyclegan_forward.1} parent=0 // pred_fallthru
    _

</llo_original>
